<compile_context>
chip_gen: v6e
topology: v6e:2x2x1
jax: 0.10.0
libtpu: 0.0.40
codegen_flags: <defaults>
</compile_context>

<pallas_src>
import jax
import jax.numpy as jnp
from jax.experimental import pallas as pl
from jax.experimental.pallas import tpu as pltpu

_OUT_PAD = 8   # pad the scalar output to 8 sublane rows (row 0 is the real output)


def _pnn_kernel(idx_ref, tableT_ref, w1eT_ref, w1cT_ref, b1T_ref,
                w2T_ref, b2T_ref, w3T_ref, b3T_ref, out_ref):
    """One batch tile; everything feature-major: (features, TB)."""
    F, TB = idx_ref.shape
    E, V = tableT_ref.shape

    idx = idx_ref[...]                                   # (F, TB) int32 global ids
    table_t = tableT_ref[...]                            # (E, V)  f32

    # --- fused embedding gather: one-hot(ids) @ table on the MXU ------------
    # TODO(synk): for large vocabularies replace this with a manual DMA row
    # gather (table in memory_space=pl.ANY + make_async_copy); the one-hot
    # matmul cost scales with V and is only appropriate for small tables.
    row_iota = jax.lax.broadcasted_iota(jnp.int32, (V, TB), 0)
    fields = []
    for f in range(F):
        onehot = (row_iota == idx[f:f + 1, :]).astype(jnp.float32)       # (V, TB)
        fields.append(jnp.dot(table_t, onehot,
                              preferred_element_type=jnp.float32))       # (E, TB)
    x_fm = jnp.concatenate(fields, axis=0)               # (F*E, TB)

    # --- pairwise inner-product cross terms ---------------------------------
    # Pair order (0,1),(0,2),...,(F-2,F-1) (matches torch-fm InnerProductNetwork).
    # Products stay lane-dense (E, TB); the sum over E is folded into w1cT
    # (each cross weight column repeated E times), so the reduction happens
    # inside the MXU matmul below instead of P separate XLU reductions.
    prods = []
    for i in range(F - 1):
        for j in range(i + 1, F):
            prods.append(fields[i] * fields[j])
    prods = jnp.concatenate(prods, axis=0)               # (P*E, TB)

    # --- MLP (inference: dropout = identity, no batch-norm) -----------------
    h = (jnp.dot(w1eT_ref[...], x_fm, preferred_element_type=jnp.float32)
         + jnp.dot(w1cT_ref[...], prods, preferred_element_type=jnp.float32)
         + b1T_ref[...])
    h = jnp.maximum(h, 0.0)
    h = jnp.dot(w2T_ref[...], h, preferred_element_type=jnp.float32) + b2T_ref[...]
    h = jnp.maximum(h, 0.0)
    out_ref[...] = (jnp.dot(w3T_ref[...], h, preferred_element_type=jnp.float32)
                    + b3T_ref[...])                      # (OUT_PAD, TB), row 0 real


def pnn_forward(x, params, *, num_fields, embed_dim, tile_b=128):
    """x: int32 (B, F) per-field categorical ids."""
    F, E = num_fields, embed_dim
    B = x.shape[0]
    num_tiles = pl.cdiv(B, tile_b)
    b_pad = num_tiles * tile_b

    table = params["table"]                              # (V, E)
    V = table.shape[0]
    P = F * (F - 1) // 2
    H1 = params["w1"].shape[1]
    H2 = params["w2"].shape[1]

    # ---- host-side layout plumbing (tiny, O(B*F) + weights) ----
    idx = x.astype(jnp.int32) + params["offsets"][None, :]          # (B, F) global ids
    idx = jnp.pad(idx, ((0, b_pad - B), (0, 0)))                    # padded rows -> id 0 (valid)
    idx_t = idx.T                                                   # (F, b_pad)

    table_t = table.T                                               # (E, V)
    w1 = params["w1"]                                               # (F*E + P, H1)
    w1e_t = w1[:F * E, :].T                                         # (H1, F*E)
    w1c_t = jnp.repeat(w1[F * E:, :].T, E, axis=1)                  # (H1, P*E)
    b1_t = params["b1"].reshape(-1, 1)                              # (H1, 1)
    w2_t = params["w2"].T                                           # (H2, H1)
    b2_t = params["b2"].reshape(-1, 1)                              # (H2, 1)
    w3_t = jnp.zeros((_OUT_PAD, H2), jnp.float32).at[0].set(params["w3"][:, 0])
    b3_t = jnp.zeros((_OUT_PAD, 1), jnp.float32).at[0, 0].set(params["b3"].reshape(-1)[0])

    def const(shape):
        return pl.BlockSpec(shape, lambda b: (0, 0))    # resident, DMA'd once

    grid_spec = pltpu.PrefetchScalarGridSpec(
        num_scalar_prefetch=0,
        grid=(num_tiles,),
        in_specs=[
            pl.BlockSpec((F, tile_b), lambda b: (0, b)),            # ids (pipelined)
            const((E, V)),                                          # table^T
            const((H1, F * E)), const((H1, P * E)), const((H1, 1)),
            const((H2, H1)), const((H2, 1)),
            const((_OUT_PAD, H2)), const((_OUT_PAD, 1)),
        ],
        out_specs=pl.BlockSpec((_OUT_PAD, tile_b), lambda b: (0, b)),
    )

    flops = 2 * b_pad * (F * V * E + F * E * H1 + P * E * H1 + H1 * H2 + H2 * _OUT_PAD)
    bytes_accessed = 4 * (idx_t.size + table_t.size + w1.size + w2_t.size
                          + w3_t.size + H1 + H2 + _OUT_PAD + _OUT_PAD * b_pad)

    out = pl.pallas_call(
        _pnn_kernel,
        out_shape=jax.ShapeDtypeStruct((_OUT_PAD, b_pad), jnp.float32),
        grid_spec=grid_spec,
        compiler_params=pltpu.CompilerParams(
            dimension_semantics=("parallel",)),
        cost_estimate=pl.CostEstimate(flops=flops, transcendentals=0,
                                      bytes_accessed=bytes_accessed),
    )(idx_t, table_t, w1e_t, w1c_t, b1_t, w2_t, b2_t, w3_t, b3_t)

    return out[0, :B]                                               # squeeze(1)


def _reference_forward(x, params, *, num_fields, embed_dim):
    """Pure-JAX reference (mirrors the torch forward)."""
    idx = x + params["offsets"][None, :]
    e = jnp.take(params["table"], idx, axis=0)                      # (B, F, E)
    B = x.shape[0]
    cols = []
    for i in range(num_fields - 1):
        for j in range(i + 1, num_fields):
            cols.append(jnp.sum(e[:, i, :] * e[:, j, :], axis=-1, keepdims=True))
    cross = jnp.concatenate(cols, axis=1)
    h = jnp.concatenate([e.reshape(B, num_fields * embed_dim), cross], axis=1)
    h = jnp.maximum(h @ params["w1"] + params["b1"], 0.0)
    h = jnp.maximum(h @ params["w2"] + params["b2"], 0.0)
    out = h @ params["w3"] + params["b3"]
    return out[:, 0]


def init_params(key, field_dims, embed_dim, mlp_dims):
    num_fields = len(field_dims)
    n_pairs = num_fields * (num_fields - 1) // 2
    in_dim = num_fields * embed_dim + n_pairs
    dims = [in_dim] + list(mlp_dims) + [1]

    ks = jax.random.split(key, 1 + 2 * (len(dims) - 1))
    params = {
        "table": jax.random.normal(ks[0], (sum(field_dims), embed_dim),
                                   dtype=jnp.float32) * 0.1,
        "offsets": jnp.asarray(
            [0] + list(jnp.cumsum(jnp.asarray(field_dims[:-1]))), dtype=jnp.int32),
    }
    for li in range(len(dims) - 1):
        d_in, d_out = dims[li], dims[li + 1]
        scale = 1.0 / jnp.sqrt(jnp.float32(d_in))
        params[f"w{li + 1}"] = (jax.random.normal(
            ks[1 + 2 * li], (d_in, d_out), dtype=jnp.float32) * scale)
        params[f"b{li + 1}"] = (jax.random.normal(
            ks[2 + 2 * li], (1, d_out), dtype=jnp.float32) * scale)
    return params


if __name__ == "__main__":
    field_dims = [10, 20, 30, 40]      # num_fields = 4, vocab = 100
    embed_dim = 16
    mlp_dims = (32, 16)
    batch = 260                        # exercises grid=(3,) batch tiles + edge padding

    key = jax.random.PRNGKey(0)
    k_par, k_x = jax.random.split(key)
    params = init_params(k_par, field_dims, embed_dim, mlp_dims)

    # x: (B, F) per-field categorical ids
    maxes = jnp.asarray(field_dims, dtype=jnp.int32)[None, :]
    x = (jax.random.randint(k_x, (batch, len(field_dims)), 0, 1 << 30,
                            dtype=jnp.int32) % maxes).astype(jnp.int32)

    out = pnn_forward(x, params, num_fields=len(field_dims), embed_dim=embed_dim)
    out = jax.block_until_ready(out)

    ref = _reference_forward(x, params, num_fields=len(field_dims),
                             embed_dim=embed_dim)
    assert out.shape == (batch,)
    # tolerance covers TPU default matmul-precision differences between the
    # restructured in-kernel dots and the XLA reference dots.
    assert jnp.allclose(out, ref, atol=5e-3, rtol=5e-3), float(jnp.max(jnp.abs(out - ref)))
    print("KERNEL_OK")
</pallas_src>

<mosaic_0001>
module attributes {stable_mosaic.version = 11 : i64} {
  func.func @_pnn_kernel(%arg0: i32, %arg1: memref<4x128xi32, #tpu.memory_space<vmem>>, %arg2: memref<16x100xf32, #tpu.memory_space<vmem>>, %arg3: memref<32x64xf32, #tpu.memory_space<vmem>>, %arg4: memref<32x96xf32, #tpu.memory_space<vmem>>, %arg5: memref<32x1xf32, #tpu.memory_space<vmem>>, %arg6: memref<16x32xf32, #tpu.memory_space<vmem>>, %arg7: memref<16x1xf32, #tpu.memory_space<vmem>>, %arg8: memref<8x16xf32, #tpu.memory_space<vmem>>, %arg9: memref<8x1xf32, #tpu.memory_space<vmem>>, %arg10: memref<8x128xf32, #tpu.memory_space<vmem>>) attributes {dimension_semantics = [#tpu.dimension_semantics<parallel>], iteration_bounds = array<i64: 3>, scalar_prefetch = 0 : i64, scratch_operands = 0 : i64, tpu.core_type = #tpu.core_type<tc>, window_params = [{transform_indices = @transform_0, window_bounds = array<i64: 4, 128>}, {pipeline_mode = #tpu.pipeline_mode<synchronous>, transform_indices = @transform_1, window_bounds = array<i64: 16, 100>}, {pipeline_mode = #tpu.pipeline_mode<synchronous>, transform_indices = @transform_2, window_bounds = array<i64: 32, 64>}, {pipeline_mode = #tpu.pipeline_mode<synchronous>, transform_indices = @transform_3, window_bounds = array<i64: 32, 96>}, {pipeline_mode = #tpu.pipeline_mode<synchronous>, transform_indices = @transform_4, window_bounds = array<i64: 32, 1>}, {pipeline_mode = #tpu.pipeline_mode<synchronous>, transform_indices = @transform_5, window_bounds = array<i64: 16, 32>}, {pipeline_mode = #tpu.pipeline_mode<synchronous>, transform_indices = @transform_6, window_bounds = array<i64: 16, 1>}, {pipeline_mode = #tpu.pipeline_mode<synchronous>, transform_indices = @transform_7, window_bounds = array<i64: 8, 16>}, {pipeline_mode = #tpu.pipeline_mode<synchronous>, transform_indices = @transform_8, window_bounds = array<i64: 8, 1>}, {transform_indices = @transform_9, window_bounds = array<i64: 8, 128>}]} {
    %c0 = arith.constant 0 : index
    %c0_0 = arith.constant 0 : index
    %0 = vector.load %arg1[%c0, %c0_0] : memref<4x128xi32, #tpu.memory_space<vmem>>, vector<4x128xi32>
    %c0_1 = arith.constant 0 : index
    %c0_2 = arith.constant 0 : index
    %1 = vector.load %arg2[%c0_1, %c0_2] : memref<16x100xf32, #tpu.memory_space<vmem>>, vector<16x100xf32>
    %2 = tpu.iota {dimensions = array<i32: 0>} : vector<100x128xi32>
    %3 = vector.extract_strided_slice %0 {offsets = [0, 0], sizes = [1, 128], strides = [1, 1]} : vector<4x128xi32> to vector<1x128xi32>
    %4 = vector.broadcast %3 : vector<1x128xi32> to vector<100x128xi32>
    %5 = arith.cmpi eq, %2, %4 : vector<100x128xi32>
    %6 = arith.extui %5 : vector<100x128xi1> to vector<100x128xi32>
    %7 = arith.sitofp %6 : vector<100x128xi32> to vector<100x128xf32>
    %cst = arith.constant dense<0.000000e+00> : vector<16x128xf32>
    %8 = tpu.matmul %1, %7, %cst {dimension_numbers = #tpu.dot_dimension_numbers<[1], [0], [0], [1], [0, 0, 1, 1], [], []>} : vector<16x100xf32>, vector<100x128xf32>, vector<16x128xf32> -> vector<16x128xf32>
    %9 = vector.extract_strided_slice %0 {offsets = [1, 0], sizes = [1, 128], strides = [1, 1]} : vector<4x128xi32> to vector<1x128xi32>
    %10 = vector.broadcast %9 : vector<1x128xi32> to vector<100x128xi32>
    %11 = arith.cmpi eq, %2, %10 : vector<100x128xi32>
    %12 = arith.extui %11 : vector<100x128xi1> to vector<100x128xi32>
    %13 = arith.sitofp %12 : vector<100x128xi32> to vector<100x128xf32>
    %cst_3 = arith.constant dense<0.000000e+00> : vector<16x128xf32>
    %14 = tpu.matmul %1, %13, %cst_3 {dimension_numbers = #tpu.dot_dimension_numbers<[1], [0], [0], [1], [0, 0, 1, 1], [], []>} : vector<16x100xf32>, vector<100x128xf32>, vector<16x128xf32> -> vector<16x128xf32>
    %15 = vector.extract_strided_slice %0 {offsets = [2, 0], sizes = [1, 128], strides = [1, 1]} : vector<4x128xi32> to vector<1x128xi32>
    %16 = vector.broadcast %15 : vector<1x128xi32> to vector<100x128xi32>
    %17 = arith.cmpi eq, %2, %16 : vector<100x128xi32>
    %18 = arith.extui %17 : vector<100x128xi1> to vector<100x128xi32>
    %19 = arith.sitofp %18 : vector<100x128xi32> to vector<100x128xf32>
    %cst_4 = arith.constant dense<0.000000e+00> : vector<16x128xf32>
    %20 = tpu.matmul %1, %19, %cst_4 {dimension_numbers = #tpu.dot_dimension_numbers<[1], [0], [0], [1], [0, 0, 1, 1], [], []>} : vector<16x100xf32>, vector<100x128xf32>, vector<16x128xf32> -> vector<16x128xf32>
    %21 = vector.extract_strided_slice %0 {offsets = [3, 0], sizes = [1, 128], strides = [1, 1]} : vector<4x128xi32> to vector<1x128xi32>
    %22 = vector.broadcast %21 : vector<1x128xi32> to vector<100x128xi32>
    %23 = arith.cmpi eq, %2, %22 : vector<100x128xi32>
    %24 = arith.extui %23 : vector<100x128xi1> to vector<100x128xi32>
    %25 = arith.sitofp %24 : vector<100x128xi32> to vector<100x128xf32>
    %cst_5 = arith.constant dense<0.000000e+00> : vector<16x128xf32>
    %26 = tpu.matmul %1, %25, %cst_5 {dimension_numbers = #tpu.dot_dimension_numbers<[1], [0], [0], [1], [0, 0, 1, 1], [], []>} : vector<16x100xf32>, vector<100x128xf32>, vector<16x128xf32> -> vector<16x128xf32>
    %27 = tpu.concatenate %8, %14, %20, %26 in 0 : vector<16x128xf32>, vector<16x128xf32>, vector<16x128xf32>, vector<16x128xf32> -> vector<64x128xf32>
    %28 = arith.mulf %8, %14 : vector<16x128xf32>
    %29 = arith.mulf %8, %20 : vector<16x128xf32>
    %30 = arith.mulf %8, %26 : vector<16x128xf32>
    %31 = arith.mulf %14, %20 : vector<16x128xf32>
    %32 = arith.mulf %14, %26 : vector<16x128xf32>
    %33 = arith.mulf %20, %26 : vector<16x128xf32>
    %34 = tpu.concatenate %28, %29, %30, %31, %32, %33 in 0 : vector<16x128xf32>, vector<16x128xf32>, vector<16x128xf32>, vector<16x128xf32>, vector<16x128xf32>, vector<16x128xf32> -> vector<96x128xf32>
    %c0_6 = arith.constant 0 : index
    %c0_7 = arith.constant 0 : index
    %35 = vector.load %arg3[%c0_6, %c0_7] : memref<32x64xf32, #tpu.memory_space<vmem>>, vector<32x64xf32>
    %cst_8 = arith.constant dense<0.000000e+00> : vector<32x128xf32>
    %36 = tpu.matmul %35, %27, %cst_8 {dimension_numbers = #tpu.dot_dimension_numbers<[1], [0], [0], [1], [0, 0, 1, 1], [], []>} : vector<32x64xf32>, vector<64x128xf32>, vector<32x128xf32> -> vector<32x128xf32>
    %c0_9 = arith.constant 0 : index
    %c0_10 = arith.constant 0 : index
    %37 = vector.load %arg4[%c0_9, %c0_10] : memref<32x96xf32, #tpu.memory_space<vmem>>, vector<32x96xf32>
    %cst_11 = arith.constant dense<0.000000e+00> : vector<32x128xf32>
    %38 = tpu.matmul %37, %34, %cst_11 {dimension_numbers = #tpu.dot_dimension_numbers<[1], [0], [0], [1], [0, 0, 1, 1], [], []>} : vector<32x96xf32>, vector<96x128xf32>, vector<32x128xf32> -> vector<32x128xf32>
    %39 = arith.addf %36, %38 : vector<32x128xf32>
    %c0_12 = arith.constant 0 : index
    %c0_13 = arith.constant 0 : index
    %40 = vector.load %arg5[%c0_12, %c0_13] : memref<32x1xf32, #tpu.memory_space<vmem>>, vector<32x1xf32>
    %41 = vector.broadcast %40 : vector<32x1xf32> to vector<32x128xf32>
    %42 = arith.addf %39, %41 : vector<32x128xf32>
    %cst_14 = arith.constant 0.000000e+00 : f32
    %43 = vector.broadcast %cst_14 : f32 to vector<32x128xf32>
    %44 = arith.maximumf %42, %43 : vector<32x128xf32>
    %c0_15 = arith.constant 0 : index
    %c0_16 = arith.constant 0 : index
    %45 = vector.load %arg6[%c0_15, %c0_16] : memref<16x32xf32, #tpu.memory_space<vmem>>, vector<16x32xf32>
    %cst_17 = arith.constant dense<0.000000e+00> : vector<16x128xf32>
    %46 = tpu.matmul %45, %44, %cst_17 {dimension_numbers = #tpu.dot_dimension_numbers<[1], [0], [0], [1], [0, 0, 1, 1], [], []>} : vector<16x32xf32>, vector<32x128xf32>, vector<16x128xf32> -> vector<16x128xf32>
    %c0_18 = arith.constant 0 : index
    %c0_19 = arith.constant 0 : index
    %47 = vector.load %arg7[%c0_18, %c0_19] : memref<16x1xf32, #tpu.memory_space<vmem>>, vector<16x1xf32>
    %48 = vector.broadcast %47 : vector<16x1xf32> to vector<16x128xf32>
    %49 = arith.addf %46, %48 : vector<16x128xf32>
    %cst_20 = arith.constant 0.000000e+00 : f32
    %50 = vector.broadcast %cst_20 : f32 to vector<16x128xf32>
    %51 = arith.maximumf %49, %50 : vector<16x128xf32>
    %c0_21 = arith.constant 0 : index
    %c0_22 = arith.constant 0 : index
    %52 = vector.load %arg8[%c0_21, %c0_22] : memref<8x16xf32, #tpu.memory_space<vmem>>, vector<8x16xf32>
    %cst_23 = arith.constant dense<0.000000e+00> : vector<8x128xf32>
    %53 = tpu.matmul %52, %51, %cst_23 {dimension_numbers = #tpu.dot_dimension_numbers<[1], [0], [0], [1], [0, 0, 1, 1], [], []>} : vector<8x16xf32>, vector<16x128xf32>, vector<8x128xf32> -> vector<8x128xf32>
    %c0_24 = arith.constant 0 : index
    %c0_25 = arith.constant 0 : index
    %54 = vector.load %arg9[%c0_24, %c0_25] : memref<8x1xf32, #tpu.memory_space<vmem>>, vector<8x1xf32>
    %55 = vector.broadcast %54 : vector<8x1xf32> to vector<8x128xf32>
    %56 = arith.addf %53, %55 : vector<8x128xf32>
    %c0_26 = arith.constant 0 : index
    %c0_27 = arith.constant 0 : index
    %57 = vector.load %arg10[%c0_26, %c0_27] : memref<8x128xf32, #tpu.memory_space<vmem>>, vector<8x128xf32>
    tpu.vector_store %arg10[%c0_26, %c0_27], %56 {strides = array<i32>} : memref<8x128xf32, #tpu.memory_space<vmem>>, vector<8x128xf32>,
    return
  }
  func.func @transform_0(%arg0: i32) -> (i32, i32) {
    %c0_i32 = arith.constant 0 : i32
    %c0_i32_0 = arith.constant 0 : i32
    return %c0_i32, %arg0 : i32, i32
  }
  func.func @transform_1(%arg0: i32) -> (i32, i32) {
    %c0_i32 = arith.constant 0 : i32
    %c0_i32_0 = arith.constant 0 : i32
    %c0_i32_1 = arith.constant 0 : i32
    return %c0_i32, %c0_i32_0 : i32, i32
  }
  func.func @transform_2(%arg0: i32) -> (i32, i32) {
    %c0_i32 = arith.constant 0 : i32
    %c0_i32_0 = arith.constant 0 : i32
    %c0_i32_1 = arith.constant 0 : i32
    return %c0_i32, %c0_i32_0 : i32, i32
  }
  func.func @transform_3(%arg0: i32) -> (i32, i32) {
    %c0_i32 = arith.constant 0 : i32
    %c0_i32_0 = arith.constant 0 : i32
    %c0_i32_1 = arith.constant 0 : i32
    return %c0_i32, %c0_i32_0 : i32, i32
  }
  func.func @transform_4(%arg0: i32) -> (i32, i32) {
    %c0_i32 = arith.constant 0 : i32
    %c0_i32_0 = arith.constant 0 : i32
    %c0_i32_1 = arith.constant 0 : i32
    return %c0_i32, %c0_i32_0 : i32, i32
  }
  func.func @transform_5(%arg0: i32) -> (i32, i32) {
    %c0_i32 = arith.constant 0 : i32
    %c0_i32_0 = arith.constant 0 : i32
    %c0_i32_1 = arith.constant 0 : i32
    return %c0_i32, %c0_i32_0 : i32, i32
  }
  func.func @transform_6(%arg0: i32) -> (i32, i32) {
    %c0_i32 = arith.constant 0 : i32
    %c0_i32_0 = arith.constant 0 : i32
    %c0_i32_1 = arith.constant 0 : i32
    return %c0_i32, %c0_i32_0 : i32, i32
  }
  func.func @transform_7(%arg0: i32) -> (i32, i32) {
    %c0_i32 = arith.constant 0 : i32
    %c0_i32_0 = arith.constant 0 : i32
    %c0_i32_1 = arith.constant 0 : i32
    return %c0_i32, %c0_i32_0 : i32, i32
  }
  func.func @transform_8(%arg0: i32) -> (i32, i32) {
    %c0_i32 = arith.constant 0 : i32
    %c0_i32_0 = arith.constant 0 : i32
    %c0_i32_1 = arith.constant 0 : i32
    return %c0_i32, %c0_i32_0 : i32, i32
  }
  func.func @transform_9(%arg0: i32) -> (i32, i32) {
    %c0_i32 = arith.constant 0 : i32
    %c0_i32_0 = arith.constant 0 : i32
    return %c0_i32, %arg0 : i32, i32
  }
}

</mosaic_0001>

<llo_original>
// kernel: tpu_custom_call.1
$region0: #{tpu_custom_call.1}
  #allocation0 [shape = 'u32[]', space=smem, size = 0x4, offset = 0x4, fixed_abs, tag = 'smem constant byte address 0x4 - core index']
  #allocation1 [shape = 'u32[144,128]{1,0:T(1,128)}', space=vmem, size = 0x12000, scoped, tag = 'internal scratch']
  %s0 = inlined_call_operand.hbm [shape: s32[4,384], index: 0, kind: input, shape index: {}]
  %s1 = inlined_call_operand.hbm [shape: f32[16,100], index: 1, kind: input, shape index: {}]
  %s2 = inlined_call_operand.vmem [shape: f32[32,64], index: 2, kind: input, shape index: {}]
  %s3 = inlined_call_operand.vmem [shape: f32[32,96], index: 3, kind: input, shape index: {}]
  %s4 = inlined_call_operand.vmem [shape: f32[32,1], index: 4, kind: input, shape index: {}]
  %s5 = inlined_call_operand.hbm [shape: f32[16,32], index: 5, kind: input, shape index: {}]
  %s6 = inlined_call_operand.vmem [shape: f32[16,1], index: 6, kind: input, shape index: {}]
  %s7 = inlined_call_operand.hbm [shape: f32[8,16], index: 7, kind: input, shape index: {}]
  %s8 = inlined_call_operand.vmem [shape: f32[8,1], index: 8, kind: input, shape index: {}]
  %s9 = inlined_call_operand.hbm [shape: f32[8,384], index: 9, kind: output, shape index: {}]
  %s10 = sld [smem:[#allocation0]]
  $region85: #{tpu_custom_call.1} parent=0
    _
  %s12 = ssub.s32 1, %s10
  %s13 = scalar_select 0, %s12, %s10
  $region1: #{tpu_custom_call.1} parent=0
    #allocation2 [shape = 'u8[4096]{0}', space=vmem, size = 0x1000, scoped, tag = 'input window, operand 0']
    #allocation3 [shape = 's32[2]{0}', space=sflag, size = 0x8, scoped, tag = 'scoped memory for tpu_custom_call.1']
    #allocation4 [shape = 's32[2]{0}', space=sflag, size = 0x8, scoped, tag = 'scoped memory for tpu_custom_call.1']
    #allocation5 [shape = 'u8[8192]{0}', space=vmem, size = 0x2000, scoped, tag = 'input window, operand 1, single buffered']
    #allocation6 [shape = 's32[1]{0}', space=sflag, size = 0x4, scoped, tag = 'scoped memory for tpu_custom_call.1']
    #allocation7 [shape = 'u8[8192]{0}', space=vmem, size = 0x2000, scoped, tag = 'input window, operand 5, single buffered']
    #allocation8 [shape = 'u8[4096]{0}', space=vmem, size = 0x1000, scoped, tag = 'input window, operand 7, single buffered']
    #allocation9 [shape = 's32[1]{0}', space=sflag, size = 0x4, scoped, tag = 'scoped memory for tpu_custom_call.1']
    #allocation10 [shape = 'u8[8192]{0}', space=vmem, size = 0x2000, scoped, tag = 'output window, operand 0']
    %14 = vsyncpa [#allocation3], 0
    %s15 = scalar_lea.sflag [#allocation3], 1
    %16 = vsyncpa %s15, 0
    %17 = vsyncpa [#allocation6], 0
    %18 = vsyncpa [#allocation9], 0
    %19 = vsyncpa [#allocation4], 0
    %s20 = scalar_lea.sflag [#allocation4], 1
    %21 = vsyncpa %s20, 0
    loop: start=0, step=1, limit=5
    $region2: #{tpu_custom_call.1} parent=1 // loop_pre_header
      _
    $region3: #{tpu_custom_call.1} parent=1 // loop_header
      %s23 = sphi 0, %s27
      %p24 = scmp.ge.s32.totalorder %s23, 5
      %s33 = sphi 0, %s35
      %s36 = sphi 0, %s33
      %s37 = sphi 0, %s36
      %s53 = sphi 0, %s37
      %s57 = sphi 0, %s57
      %s59 = sphi 0, %s57
      %s60 = sphi 0, %s59
      %s74 = sphi 0, %s60
      %s78 = sphi 0, %s78
      %s80 = sphi 0, %s78
      %s81 = sphi 0, %s80
      %s95 = sphi 0, %s81
      %s99 = sphi 0, %s99
      %s101 = sphi 0, %s99
      %s102 = sphi 0, %s101
      %s116 = sphi 0, %s102
      %s120 = sphi 0, %s120
      %s122 = sphi 0, %s120
      %s123 = sphi 0, %s122
      %s137 = sphi 0, %s123
      %s141 = sphi 0, %s141
      %s143 = sphi 0, %s141
      %s144 = sphi 0, %s143
      %s158 = sphi 0, %s144
      %s162 = sphi 0, %s162
      %s164 = sphi 0, %s162
      %s165 = sphi 0, %s164
      %s179 = sphi 0, %s165
      %s183 = sphi 0, %s183
      %s185 = sphi 0, %s183
      %s186 = sphi 0, %s185
      %s200 = sphi 0, %s186
      %s204 = sphi 0, %s204
      %s206 = sphi 0, %s204
      %s207 = sphi 0, %s206
      %s221 = sphi 0, %s207
      %s227 = sphi 0, %s229
      %s230 = sphi 0, %s227
      %s231 = sphi 0, %s230
      %s247 = sphi 0, %s231
    $region4: #{tpu_custom_call.1} parent=1 // loop_header_branch
      %26 = sbr.rel (%p24) target = $region8
    $region5: #{tpu_custom_call.1} parent=1 // loop_body
      %s28 = ssub.s32 %s23, 1
      %s29 = ssub.s32 %s23, 2
      %s30 = sadd.s32 %s23, 1
      %s31 = ssub.s32 %s23, %s30
      %p32 = scmp.eq.s32.totalorder %s31, 0
      %s34 = sadd.s32 %s33, 1
      %s35 = scalar_select %p32, %s33, %s34
      %p38 = pneg %p32
      %p39 = scmp.eq.s32.totalorder %s23, 2
      %p40 = por %p38, %p39
      %p41 = scmp.ne.s32.totalorder %s33, %s36
      %p42 = scmp.eq.s32.totalorder %s23, 0
      %p43 = por %p41, %p42
      %p44 = scmp.ne.s32.totalorder %s33, %s36
      %p45 = scmp.eq.s32.totalorder %s28, 2
      %p46 = por %p44, %p45
      %p47 = scmp.ne.s32.totalorder %s36, %s37
      %p48 = scmp.eq.s32.totalorder %s28, 0
      %p49 = por %p47, %p48
      %p50 = scmp.ne.s32.totalorder %s36, %s37
      %p51 = scmp.eq.s32.totalorder %s29, 2
      %p52 = por %p50, %p51
      %p54 = scmp.ne.s32.totalorder %s37, %s53
      %p55 = scmp.eq.s32.totalorder %s29, 0
      %p56 = por %p54, %p55
      %s58 = sadd.s32 %s57, 1
      %p61 = scmp.eq.s32.totalorder %s23, 2
      %p62 = scmp.ne.s32.totalorder %s57, %s59
      %p63 = scmp.eq.s32.totalorder %s23, 0
      %p64 = por %p62, %p63
      %p65 = scmp.ne.s32.totalorder %s57, %s59
      %p66 = scmp.eq.s32.totalorder %s28, 2
      %p67 = por %p65, %p66
      %p68 = scmp.ne.s32.totalorder %s59, %s60
      %p69 = scmp.eq.s32.totalorder %s28, 0
      %p70 = por %p68, %p69
      %p71 = scmp.ne.s32.totalorder %s59, %s60
      %p72 = scmp.eq.s32.totalorder %s29, 2
      %p73 = por %p71, %p72
      %p75 = scmp.ne.s32.totalorder %s60, %s74
      %p76 = scmp.eq.s32.totalorder %s29, 0
      %p77 = por %p75, %p76
      %s79 = sadd.s32 %s78, 1
      %p82 = scmp.eq.s32.totalorder %s23, 2
      %p83 = scmp.ne.s32.totalorder %s78, %s80
      %p84 = scmp.eq.s32.totalorder %s23, 0
      %p85 = por %p83, %p84
      %p86 = scmp.ne.s32.totalorder %s78, %s80
      %p87 = scmp.eq.s32.totalorder %s28, 2
      %p88 = por %p86, %p87
      %p89 = scmp.ne.s32.totalorder %s80, %s81
      %p90 = scmp.eq.s32.totalorder %s28, 0
      %p91 = por %p89, %p90
      %p92 = scmp.ne.s32.totalorder %s80, %s81
      %p93 = scmp.eq.s32.totalorder %s29, 2
      %p94 = por %p92, %p93
      %p96 = scmp.ne.s32.totalorder %s81, %s95
      %p97 = scmp.eq.s32.totalorder %s29, 0
      %p98 = por %p96, %p97
      %s100 = sadd.s32 %s99, 1
      %p103 = scmp.eq.s32.totalorder %s23, 2
      %p104 = scmp.ne.s32.totalorder %s99, %s101
      %p105 = scmp.eq.s32.totalorder %s23, 0
      %p106 = por %p104, %p105
      %p107 = scmp.ne.s32.totalorder %s99, %s101
      %p108 = scmp.eq.s32.totalorder %s28, 2
      %p109 = por %p107, %p108
      %p110 = scmp.ne.s32.totalorder %s101, %s102
      %p111 = scmp.eq.s32.totalorder %s28, 0
      %p112 = por %p110, %p111
      %p113 = scmp.ne.s32.totalorder %s101, %s102
      %p114 = scmp.eq.s32.totalorder %s29, 2
      %p115 = por %p113, %p114
      %p117 = scmp.ne.s32.totalorder %s102, %s116
      %p118 = scmp.eq.s32.totalorder %s29, 0
      %p119 = por %p117, %p118
      %s121 = sadd.s32 %s120, 1
      %p124 = scmp.eq.s32.totalorder %s23, 2
      %p125 = scmp.ne.s32.totalorder %s120, %s122
      %p126 = scmp.eq.s32.totalorder %s23, 0
      %p127 = por %p125, %p126
      %p128 = scmp.ne.s32.totalorder %s120, %s122
      %p129 = scmp.eq.s32.totalorder %s28, 2
      %p130 = por %p128, %p129
      %p131 = scmp.ne.s32.totalorder %s122, %s123
      %p132 = scmp.eq.s32.totalorder %s28, 0
      %p133 = por %p131, %p132
      %p134 = scmp.ne.s32.totalorder %s122, %s123
      %p135 = scmp.eq.s32.totalorder %s29, 2
      %p136 = por %p134, %p135
      %p138 = scmp.ne.s32.totalorder %s123, %s137
      %p139 = scmp.eq.s32.totalorder %s29, 0
      %p140 = por %p138, %p139
      %s142 = sadd.s32 %s141, 1
      %p145 = scmp.eq.s32.totalorder %s23, 2
      %p146 = scmp.ne.s32.totalorder %s141, %s143
      %p147 = scmp.eq.s32.totalorder %s23, 0
      %p148 = por %p146, %p147
      %p149 = scmp.ne.s32.totalorder %s141, %s143
      %p150 = scmp.eq.s32.totalorder %s28, 2
      %p151 = por %p149, %p150
      %p152 = scmp.ne.s32.totalorder %s143, %s144
      %p153 = scmp.eq.s32.totalorder %s28, 0
      %p154 = por %p152, %p153
      %p155 = scmp.ne.s32.totalorder %s143, %s144
      %p156 = scmp.eq.s32.totalorder %s29, 2
      %p157 = por %p155, %p156
      %p159 = scmp.ne.s32.totalorder %s144, %s158
      %p160 = scmp.eq.s32.totalorder %s29, 0
      %p161 = por %p159, %p160
      %s163 = sadd.s32 %s162, 1
      %p166 = scmp.eq.s32.totalorder %s23, 2
      %p167 = scmp.ne.s32.totalorder %s162, %s164
      %p168 = scmp.eq.s32.totalorder %s23, 0
      %p169 = por %p167, %p168
      %p170 = scmp.ne.s32.totalorder %s162, %s164
      %p171 = scmp.eq.s32.totalorder %s28, 2
      %p172 = por %p170, %p171
      %p173 = scmp.ne.s32.totalorder %s164, %s165
      %p174 = scmp.eq.s32.totalorder %s28, 0
      %p175 = por %p173, %p174
      %p176 = scmp.ne.s32.totalorder %s164, %s165
      %p177 = scmp.eq.s32.totalorder %s29, 2
      %p178 = por %p176, %p177
      %p180 = scmp.ne.s32.totalorder %s165, %s179
      %p181 = scmp.eq.s32.totalorder %s29, 0
      %p182 = por %p180, %p181
      %s184 = sadd.s32 %s183, 1
      %p187 = scmp.eq.s32.totalorder %s23, 2
      %p188 = scmp.ne.s32.totalorder %s183, %s185
      %p189 = scmp.eq.s32.totalorder %s23, 0
      %p190 = por %p188, %p189
      %p191 = scmp.ne.s32.totalorder %s183, %s185
      %p192 = scmp.eq.s32.totalorder %s28, 2
      %p193 = por %p191, %p192
      %p194 = scmp.ne.s32.totalorder %s185, %s186
      %p195 = scmp.eq.s32.totalorder %s28, 0
      %p196 = por %p194, %p195
      %p197 = scmp.ne.s32.totalorder %s185, %s186
      %p198 = scmp.eq.s32.totalorder %s29, 2
      %p199 = por %p197, %p198
      %p201 = scmp.ne.s32.totalorder %s186, %s200
      %p202 = scmp.eq.s32.totalorder %s29, 0
      %p203 = por %p201, %p202
      %s205 = sadd.s32 %s204, 1
      %p208 = scmp.eq.s32.totalorder %s23, 2
      %p209 = scmp.ne.s32.totalorder %s204, %s206
      %p210 = scmp.eq.s32.totalorder %s23, 0
      %p211 = por %p209, %p210
      %p212 = scmp.ne.s32.totalorder %s204, %s206
      %p213 = scmp.eq.s32.totalorder %s28, 2
      %p214 = por %p212, %p213
      %p215 = scmp.ne.s32.totalorder %s206, %s207
      %p216 = scmp.eq.s32.totalorder %s28, 0
      %p217 = por %p215, %p216
      %p218 = scmp.ne.s32.totalorder %s206, %s207
      %p219 = scmp.eq.s32.totalorder %s29, 2
      %p220 = por %p218, %p219
      %p222 = scmp.ne.s32.totalorder %s207, %s221
      %p223 = scmp.eq.s32.totalorder %s29, 0
      %p224 = por %p222, %p223
      %s225 = ssub.s32 %s23, %s30
      %p226 = scmp.eq.s32.totalorder %s225, 0
      %s228 = sadd.s32 %s227, 1
      %s229 = scalar_select %p226, %s227, %s228
      %p232 = pneg %p226
      %p233 = scmp.eq.s32.totalorder %s23, 2
      %p234 = por %p232, %p233
      %p235 = scmp.ne.s32.totalorder %s227, %s230
      %p236 = scmp.eq.s32.totalorder %s23, 0
      %p237 = por %p235, %p236
      %p238 = scmp.ne.s32.totalorder %s227, %s230
      %p239 = scmp.eq.s32.totalorder %s28, 2
      %p240 = por %p238, %p239
      %p241 = scmp.ne.s32.totalorder %s230, %s231
      %p242 = scmp.eq.s32.totalorder %s28, 0
      %p243 = por %p241, %p242
      %p244 = scmp.ne.s32.totalorder %s230, %s231
      %p245 = scmp.eq.s32.totalorder %s29, 2
      %p246 = por %p244, %p245
      %p248 = scmp.ne.s32.totalorder %s231, %s247
      %p249 = scmp.eq.s32.totalorder %s29, 0
      %p250 = por %p248, %p249
      %p251 = scmp.le.s32.totalorder 1, %s23
      %p252 = scmp.lt.s32.totalorder %s23, 4
      %p253 = pnand %p251, %p252
      %p254 = pneg %p253
      // Predicated region
      $region9: #{tpu_custom_call.1} parent=5 // pred_check
        _
      $region10: #{tpu_custom_call.1} parent=5 // pred_check_branch
        %256 = sbr.rel (%p253) target = $region12
      $region11: #{tpu_custom_call.1} parent=5 // pred_region
        %s257 = ssub.s32 %s23, 1
        // Predicated region
        $region13: #{tpu_custom_call.1} parent=11 // pred_check
          %p258 = pneg %p70
        $region14: #{tpu_custom_call.1} parent=11 // pred_check_branch
          %260 = sbr.rel (%p258) target = $region16
        $region15: #{tpu_custom_call.1} parent=11 // pred_region
          %s262 = ssub.s32 256, 256
          %263 = vsyncadd [#allocation6], %s262
          %s264 = sshll.u32 [#allocation5], 4
          %s265 = int_to_ptr.vmem [resolvable:$true] %s264
          %270 = dma.hbm_to_vmem [thread:$0]  %s1, 256, %s265, [#allocation6], 128, 128, 8
        $region16: #{tpu_custom_call.1} parent=11 // pred_fallthru
          _
        // Predicated region
        $region17: #{tpu_custom_call.1} parent=11 // pred_check
          %p271 = pneg %p91
        $region18: #{tpu_custom_call.1} parent=11 // pred_check_branch
          %273 = sbr.rel (%p271) target = $region20
        $region19: #{tpu_custom_call.1} parent=11 // pred_region
          _
        $region20: #{tpu_custom_call.1} parent=11 // pred_fallthru
          _
        // Predicated region
        $region21: #{tpu_custom_call.1} parent=11 // pred_check
          %p274 = pneg %p112
        $region22: #{tpu_custom_call.1} parent=11 // pred_check_branch
          %276 = sbr.rel (%p274) target = $region24
        $region23: #{tpu_custom_call.1} parent=11 // pred_region
          _
        $region24: #{tpu_custom_call.1} parent=11 // pred_fallthru
          _
        // Predicated region
        $region25: #{tpu_custom_call.1} parent=11 // pred_check
          %p277 = pneg %p133
        $region26: #{tpu_custom_call.1} parent=11 // pred_check_branch
          %279 = sbr.rel (%p277) target = $region28
        $region27: #{tpu_custom_call.1} parent=11 // pred_region
          _
        $region28: #{tpu_custom_call.1} parent=11 // pred_fallthru
          _
        // Predicated region
        $region29: #{tpu_custom_call.1} parent=11 // pred_check
          %p280 = pneg %p154
        $region30: #{tpu_custom_call.1} parent=11 // pred_check_branch
          %282 = sbr.rel (%p280) target = $region32
        $region31: #{tpu_custom_call.1} parent=11 // pred_region
          %s284 = ssub.s32 256, 256
          %285 = vsyncadd [#allocation6], %s284
          %s286 = sshll.u32 [#allocation7], 4
          %s287 = int_to_ptr.vmem [resolvable:$true] %s286
          %292 = dma.hbm_to_vmem [thread:$0]  %s5, 256, %s287, [#allocation6], 128, 128, 8
        $region32: #{tpu_custom_call.1} parent=11 // pred_fallthru
          _
        // Predicated region
        $region33: #{tpu_custom_call.1} parent=11 // pred_check
          %p293 = pneg %p175
        $region34: #{tpu_custom_call.1} parent=11 // pred_check_branch
          %295 = sbr.rel (%p293) target = $region36
        $region35: #{tpu_custom_call.1} parent=11 // pred_region
          _
        $region36: #{tpu_custom_call.1} parent=11 // pred_fallthru
          _
        // Predicated region
        $region37: #{tpu_custom_call.1} parent=11 // pred_check
          %p296 = pneg %p196
        $region38: #{tpu_custom_call.1} parent=11 // pred_check_branch
          %298 = sbr.rel (%p296) target = $region40
        $region39: #{tpu_custom_call.1} parent=11 // pred_region
          %s300 = ssub.s32 128, 128
          %301 = vsyncadd [#allocation9], %s300
          %s303 = sshll.u32 [#allocation8], 4
          %s304 = int_to_ptr.vmem [resolvable:$true] %s303
          %306 = dma.hbm_to_vmem [thread:$0]  %s7, 128, %s304, [#allocation9]
        $region40: #{tpu_custom_call.1} parent=11 // pred_fallthru
          _
        // Predicated region
        $region41: #{tpu_custom_call.1} parent=11 // pred_check
          %p307 = pneg %p217
        $region42: #{tpu_custom_call.1} parent=11 // pred_check_branch
          %309 = sbr.rel (%p307) target = $region44
        $region43: #{tpu_custom_call.1} parent=11 // pred_region
          _
        $region44: #{tpu_custom_call.1} parent=11 // pred_fallthru
          _
      $region12: #{tpu_custom_call.1} parent=5 // pred_fallthru
        _
      %p310 = scmp.lt.s32.totalorder %s23, 3
      // Predicated region
      $region45: #{tpu_custom_call.1} parent=5 // pred_check
        %p311 = pneg %p310
      $region46: #{tpu_custom_call.1} parent=5 // pred_check_branch
        %313 = sbr.rel (%p311) target = $region48
      $region47: #{tpu_custom_call.1} parent=5 // pred_region
        // Predicated region
        $region49: #{tpu_custom_call.1} parent=47 // pred_check
          %p314 = pneg %p43
        $region50: #{tpu_custom_call.1} parent=47 // pred_check_branch
          %316 = sbr.rel (%p314) target = $region52
        $region51: #{tpu_custom_call.1} parent=47 // pred_region
          %s317 = sand.u32 %s33, 1
          %s318 = scalar_lea.sflag [#allocation3], %s317
          %s319 = sand.u32 %s33, 1
          %s320 = smul.addr %s319, 4
          %s321 = scalar_lea.vmem [#allocation2], %s320
          %s323 = ssub.s32 64, 64
          %324 = vsyncadd %s318, %s323
          %s325 = smul.addr %s23, 64
          %s326 = scalar_lea.hbm %s0, %s325
          %s328 = sshll.u32 %s321, 4
          %s329 = int_to_ptr.vmem [resolvable:$true] %s328
          %331 = dma.hbm_to_vmem [thread:$0]  %s326, 64, %s329, %s318
        $region52: #{tpu_custom_call.1} parent=47 // pred_fallthru
          _
      $region48: #{tpu_custom_call.1} parent=5 // pred_fallthru
        _
      %p332 = scmp.le.s32.totalorder 1, %s23
      %p333 = scmp.lt.s32.totalorder %s23, 4
      %p334 = pnand %p332, %p333
      %p335 = pneg %p334
      // Predicated region
      $region53: #{tpu_custom_call.1} parent=5 // pred_check
        _
      $region54: #{tpu_custom_call.1} parent=5 // pred_check_branch
        %337 = sbr.rel (%p334) target = $region56
      $region55: #{tpu_custom_call.1} parent=5 // pred_region
        %s338 = ssub.s32 %s23, 1
        %s339 = sand.u32 %s36, 1
        %s340 = scalar_lea.sflag [#allocation3], %s339
        %s341 = sand.u32 %s36, 1
        %s342 = smul.addr %s341, 4
        %s343 = scalar_lea.vmem [#allocation2], %s342
        // Predicated region
        $region57: #{tpu_custom_call.1} parent=55 // pred_check
          %p344 = pneg %p49
        $region58: #{tpu_custom_call.1} parent=55 // pred_check_branch
          %346 = sbr.rel (%p344) target = $region60
        $region59: #{tpu_custom_call.1} parent=55 // pred_region
          %347 = dma.done %s340, 64
        $region60: #{tpu_custom_call.1} parent=55 // pred_fallthru
          _
        // Predicated region
        $region61: #{tpu_custom_call.1} parent=55 // pred_check
          %p348 = pneg %p70
        $region62: #{tpu_custom_call.1} parent=55 // pred_check_branch
          %350 = sbr.rel (%p348) target = $region64
        $region63: #{tpu_custom_call.1} parent=55 // pred_region
          %351 = dma.done [#allocation6], 256
        $region64: #{tpu_custom_call.1} parent=55 // pred_fallthru
          _
        // Predicated region
        $region65: #{tpu_custom_call.1} parent=55 // pred_check
          %p352 = pneg %p154
        $region66: #{tpu_custom_call.1} parent=55 // pred_check_branch
          %354 = sbr.rel (%p352) target = $region68
        $region67: #{tpu_custom_call.1} parent=55 // pred_region
          %355 = dma.done [#allocation6], 256
        $region68: #{tpu_custom_call.1} parent=55 // pred_fallthru
          _
        // Predicated region
        $region69: #{tpu_custom_call.1} parent=55 // pred_check
          %p356 = pneg %p196
        $region70: #{tpu_custom_call.1} parent=55 // pred_check_branch
          %358 = sbr.rel (%p356) target = $region72
        $region71: #{tpu_custom_call.1} parent=55 // pred_region
          %359 = dma.done [#allocation9], 128
        $region72: #{tpu_custom_call.1} parent=55 // pred_fallthru
          _
        %s360 = sand.u32 %s36, 1
        %s361 = scalar_lea.sflag [#allocation3], %s360
        %s362 = sand.u32 %s36, 1
        %s363 = smul.addr %s362, 4
        %s364 = scalar_lea.vmem [#allocation2], %s363
        %p365 = pneg %p49
        %p366 = pneg %p46
        %p367 = pneg %p70
        %p368 = pneg %p67
        %p369 = pneg %p91
        %p370 = pneg %p88
        %p371 = pneg %p112
        %p372 = pneg %p109
        %p373 = pneg %p133
        %p374 = pneg %p130
        %p375 = pneg %p154
        %p376 = pneg %p151
        %p377 = pneg %p175
        %p378 = pneg %p172
        %p379 = pneg %p196
        %p380 = pneg %p193
        %p381 = pneg %p217
        %p382 = pneg %p214
        %p383 = pneg %p243
        %p384 = pneg %p240
        %s385 = sand.u32 %s230, 1
        %s386 = scalar_lea.sflag [#allocation4], %s385
        %s387 = sand.u32 %s230, 1
        %s388 = smul.addr %s387, 8
        %s389 = scalar_lea.vmem [#allocation10], %s388
        %v390 = vld [vmem:[%s343] sm:$0xf]
        %v391 = vld [vmem:[#allocation5] sm:$0xff]
        %v392 = vld [vmem:[#allocation5 + $0x8] sm:$0xff]
        %v393 = vlaneseq
        %v394 = vshrl.u32 %v393, 7
        %v395 = vadd.s32 %v394, 8
        %v396 = vadd.s32 %v394, 16
        %v397 = vadd.s32 %v394, 24
        %v398 = vadd.s32 %v394, 32
        %v399 = vadd.s32 %v394, 40
        %v400 = vadd.s32 %v394, 48
        %v401 = vadd.s32 %v394, 56
        %v402 = vadd.s32 %v394, 64
        %v403 = vadd.s32 %v394, 72
        %v404 = vadd.s32 %v394, 80
        %v405 = vadd.s32 %v394, 88
        %v406 = vadd.s32 %v394, 96
        %v407 = vlaneseq
        %v408 = vshrl.u32 %v407, 7
        %v409 = vsub.s32 0, %v408
        %v410 = vrot.slane %v390, %v409
        %vm411 = vcmp.eq.s32.totalorder %v394, %v410
        %vm412 = vcmp.eq.s32.totalorder %v395, %v410
        %vm413 = vcmp.eq.s32.totalorder %v396, %v410
        %vm414 = vcmp.eq.s32.totalorder %v397, %v410
        %vm415 = vcmp.eq.s32.totalorder %v398, %v410
        %vm416 = vcmp.eq.s32.totalorder %v399, %v410
        %vm417 = vcmp.eq.s32.totalorder %v400, %v410
        %vm418 = vcmp.eq.s32.totalorder %v401, %v410
        %vm419 = vcmp.eq.s32.totalorder %v402, %v410
        %vm420 = vcmp.eq.s32.totalorder %v403, %v410
        %vm421 = vcmp.eq.s32.totalorder %v404, %v410
        %vm422 = vcmp.eq.s32.totalorder %v405, %v410
        %vm423 = vcmp.eq.s32.totalorder %v406, %v410
        %v424 = vsel %vm411, 1, 0
        %v425 = vsel %vm412, 1, 0
        %v426 = vsel %vm413, 1, 0
        %v427 = vsel %vm414, 1, 0
        %v428 = vsel %vm415, 1, 0
        %v429 = vsel %vm416, 1, 0
        %v430 = vsel %vm417, 1, 0
        %v431 = vsel %vm418, 1, 0
        %v432 = vsel %vm419, 1, 0
        %v433 = vsel %vm420, 1, 0
        %v434 = vsel %vm421, 1, 0
        %v435 = vsel %vm422, 1, 0
        %v436 = vsel %vm423, 1, 0
        %v437 = vcvt.s32.f32 %v424
        %v438 = vcvt.s32.f32 %v425
        %v439 = vcvt.s32.f32 %v426
        %v440 = vcvt.s32.f32 %v427
        %v441 = vcvt.s32.f32 %v428
        %v442 = vcvt.s32.f32 %v429
        %v443 = vcvt.s32.f32 %v430
        %v444 = vcvt.s32.f32 %v431
        %v445 = vcvt.s32.f32 %v432
        %v446 = vcvt.s32.f32 %v433
        %v447 = vcvt.s32.f32 %v434
        %v448 = vcvt.s32.f32 %v435
        %v449 = vcvt.s32.f32 %v436
        %vm450 = vcmask 818176
        %v452 = vsel %vm450, %v391, 0
        %v455 = vsel %vm450, %v392, 0
        %vm457 = vcmask 1043456
        %v459 = vsel %vm457, %v449, 0
        %461 = vmatprep.subr.mxu0 0.0
        %462 = vmatpush1.msra.mxu0 0.0
        %463 = vmatprep.subr.mxu0 0.0
        %464 = vmatpush1.msra.mxu0 0.0
        %465 = vmatprep.subr.mxu0 0.0
        %466 = vmatpush1.msra.mxu0 0.0
        %467 = vmatprep.subr.mxu0 0.0
        %468 = vmatpush1.msra.mxu0 %v459
        %469 = vmatprep.subr.mxu0 0.0
        %470 = vmatpush1.msra.mxu0 %v448
        %471 = vmatprep.subr.mxu0 0.0
        %472 = vmatpush1.msra.mxu0 %v447
        %473 = vmatprep.subr.mxu0 0.0
        %474 = vmatpush1.msra.mxu0 %v446
        %475 = vmatprep.subr.mxu0 0.0
        %476 = vmatpush1.msra.mxu0 %v445
        %477 = vmatprep.subr.mxu0 0.0
        %478 = vmatpush1.msra.mxu0 %v444
        %479 = vmatprep.subr.mxu0 0.0
        %480 = vmatpush1.msra.mxu0 %v443
        %481 = vmatprep.subr.mxu0 0.0
        %482 = vmatpush1.msra.mxu0 %v442
        %483 = vmatprep.subr.mxu0 0.0
        %484 = vmatpush1.msra.mxu0 %v441
        %485 = vmatprep.subr.mxu0 0.0
        %486 = vmatpush1.msra.mxu0 %v440
        %487 = vmatprep.subr.mxu0 0.0
        %488 = vmatpush1.msra.mxu0 %v439
        %489 = vmatprep.subr.mxu0 0.0
        %490 = vmatpush1.msra.mxu0 %v438
        %491 = vmatprep.subr.mxu0 0.0
        %492 = vmatpush1.msra.mxu0 %v437
        %493 = vmatprep.subr.mxu0 0.0
        %494 = vmatpush2.msra.mxu0 0.0
        %495 = vmatprep.subr.mxu0 0.0
        %496 = vmatpush2.msra.mxu0 0.0
        %497 = vmatprep.subr.mxu0 0.0
        %498 = vmatpush2.msra.mxu0 0.0
        %499 = vmatprep.subr.mxu0 0.0
        %500 = vmatpush2.msra.mxu0 0.0
        %501 = vmatprep.subr.mxu0 0.0
        %502 = vmatpush2.msra.mxu0 0.0
        %503 = vmatprep.subr.mxu0 0.0
        %504 = vmatpush2.msra.mxu0 0.0
        %505 = vmatprep.subr.mxu0 0.0
        %506 = vmatpush2.msra.mxu0 0.0
        %507 = vmatprep.subr.mxu0 0.0
        %508 = vmatpush2.msra.mxu0 0.0
        %509 = vmatprep.subr.mxu0 0.0
        %510 = vmatpush2.msra.mxu0 0.0
        %511 = vmatprep.subr.mxu0 0.0
        %512 = vmatpush2.msra.mxu0 0.0
        %513 = vmatprep.subr.mxu0 0.0
        %514 = vmatpush2.msra.mxu0 0.0
        %515 = vmatprep.subr.mxu0 0.0
        %516 = vmatpush2.msra.mxu0 0.0
        %517 = vmatprep.subr.mxu0 0.0
        %518 = vmatpush2.msra.mxu0 0.0
        %519 = vmatprep.subr.mxu0 0.0
        %520 = vmatpush2.msra.mxu0 0.0
        %521 = vmatprep.subr.mxu0 0.0
        %522 = vmatpush2.msra.mxu0 0.0
        %523 = vmatprep.subr.mxu0 0.0
        %524 = vmatpush2.msra.mxu0 0.0
        %525 = vmatprep.mubr.f32.mxu0 0.0
        %526 = vmatmul.mubr.f32.gmra.mxu0 %v452
        %v527 = vpop.f32.mrf.mxu0
        %v528 = vadd.f32 0.0, %v527
        %v529 = vpop.f32.mrf.mxu0
        %530 = vmatprep.mubr.f32.mxu0 0.0
        %531 = vmatmul.mubr.f32.gmra.mxu0 %v455
        %v532 = vpop.f32.mrf.mxu0
        %v533 = vadd.f32 0.0, %v532
        %v534 = vpop.f32.mrf.mxu0
        %535 = vdwg.mxu0
        %v536 = vlaneseq
        %v537 = vshrl.u32 %v536, 7
        %v538 = vsub.s32 1, %v537
        %v539 = vrot.slane %v390, %v538
        %vm540 = vcmp.eq.s32.totalorder %v394, %v539
        %vm541 = vcmp.eq.s32.totalorder %v395, %v539
        %vm542 = vcmp.eq.s32.totalorder %v396, %v539
        %vm543 = vcmp.eq.s32.totalorder %v397, %v539
        %vm544 = vcmp.eq.s32.totalorder %v398, %v539
        %vm545 = vcmp.eq.s32.totalorder %v399, %v539
        %vm546 = vcmp.eq.s32.totalorder %v400, %v539
        %vm547 = vcmp.eq.s32.totalorder %v401, %v539
        %vm548 = vcmp.eq.s32.totalorder %v402, %v539
        %vm549 = vcmp.eq.s32.totalorder %v403, %v539
        %vm550 = vcmp.eq.s32.totalorder %v404, %v539
        %vm551 = vcmp.eq.s32.totalorder %v405, %v539
        %vm552 = vcmp.eq.s32.totalorder %v406, %v539
        %v553 = vsel %vm540, 1, 0
        %v554 = vsel %vm541, 1, 0
        %v555 = vsel %vm542, 1, 0
        %v556 = vsel %vm543, 1, 0
        %v557 = vsel %vm544, 1, 0
        %v558 = vsel %vm545, 1, 0
        %v559 = vsel %vm546, 1, 0
        %v560 = vsel %vm547, 1, 0
        %v561 = vsel %vm548, 1, 0
        %v562 = vsel %vm549, 1, 0
        %v563 = vsel %vm550, 1, 0
        %v564 = vsel %vm551, 1, 0
        %v565 = vsel %vm552, 1, 0
        %v566 = vcvt.s32.f32 %v553
        %v567 = vcvt.s32.f32 %v554
        %v568 = vcvt.s32.f32 %v555
        %v569 = vcvt.s32.f32 %v556
        %v570 = vcvt.s32.f32 %v557
        %v571 = vcvt.s32.f32 %v558
        %v572 = vcvt.s32.f32 %v559
        %v573 = vcvt.s32.f32 %v560
        %v574 = vcvt.s32.f32 %v561
        %v575 = vcvt.s32.f32 %v562
        %v576 = vcvt.s32.f32 %v563
        %v577 = vcvt.s32.f32 %v564
        %v578 = vcvt.s32.f32 %v565
        %v580 = vsel %vm457, %v578, 0
        %582 = vmatprep.subr.mxu0 0.0
        %583 = vmatpush1.msra.mxu0 0.0
        %584 = vmatprep.subr.mxu0 0.0
        %585 = vmatpush1.msra.mxu0 0.0
        %586 = vmatprep.subr.mxu0 0.0
        %587 = vmatpush1.msra.mxu0 0.0
        %588 = vmatprep.subr.mxu0 0.0
        %589 = vmatpush1.msra.mxu0 %v580
        %590 = vmatprep.subr.mxu0 0.0
        %591 = vmatpush1.msra.mxu0 %v577
        %592 = vmatprep.subr.mxu0 0.0
        %593 = vmatpush1.msra.mxu0 %v576
        %594 = vmatprep.subr.mxu0 0.0
        %595 = vmatpush1.msra.mxu0 %v575
        %596 = vmatprep.subr.mxu0 0.0
        %597 = vmatpush1.msra.mxu0 %v574
        %598 = vmatprep.subr.mxu0 0.0
        %599 = vmatpush1.msra.mxu0 %v573
        %600 = vmatprep.subr.mxu0 0.0
        %601 = vmatpush1.msra.mxu0 %v572
        %602 = vmatprep.subr.mxu0 0.0
        %603 = vmatpush1.msra.mxu0 %v571
        %604 = vmatprep.subr.mxu0 0.0
        %605 = vmatpush1.msra.mxu0 %v570
        %606 = vmatprep.subr.mxu0 0.0
        %607 = vmatpush1.msra.mxu0 %v569
        %608 = vmatprep.subr.mxu0 0.0
        %609 = vmatpush1.msra.mxu0 %v568
        %610 = vmatprep.subr.mxu0 0.0
        %611 = vmatpush1.msra.mxu0 %v567
        %612 = vmatprep.subr.mxu0 0.0
        %613 = vmatpush1.msra.mxu0 %v566
        %614 = vmatprep.subr.mxu0 0.0
        %615 = vmatpush2.msra.mxu0 0.0
        %616 = vmatprep.subr.mxu0 0.0
        %617 = vmatpush2.msra.mxu0 0.0
        %618 = vmatprep.subr.mxu0 0.0
        %619 = vmatpush2.msra.mxu0 0.0
        %620 = vmatprep.subr.mxu0 0.0
        %621 = vmatpush2.msra.mxu0 0.0
        %622 = vmatprep.subr.mxu0 0.0
        %623 = vmatpush2.msra.mxu0 0.0
        %624 = vmatprep.subr.mxu0 0.0
        %625 = vmatpush2.msra.mxu0 0.0
        %626 = vmatprep.subr.mxu0 0.0
        %627 = vmatpush2.msra.mxu0 0.0
        %628 = vmatprep.subr.mxu0 0.0
        %629 = vmatpush2.msra.mxu0 0.0
        %630 = vmatprep.subr.mxu0 0.0
        %631 = vmatpush2.msra.mxu0 0.0
        %632 = vmatprep.subr.mxu0 0.0
        %633 = vmatpush2.msra.mxu0 0.0
        %634 = vmatprep.subr.mxu0 0.0
        %635 = vmatpush2.msra.mxu0 0.0
        %636 = vmatprep.subr.mxu0 0.0
        %637 = vmatpush2.msra.mxu0 0.0
        %638 = vmatprep.subr.mxu0 0.0
        %639 = vmatpush2.msra.mxu0 0.0
        %640 = vmatprep.subr.mxu0 0.0
        %641 = vmatpush2.msra.mxu0 0.0
        %642 = vmatprep.subr.mxu0 0.0
        %643 = vmatpush2.msra.mxu0 0.0
        %644 = vmatprep.subr.mxu0 0.0
        %645 = vmatpush2.msra.mxu0 0.0
        %646 = vmatprep.mubr.f32.mxu0 0.0
        %647 = vmatmul.mubr.f32.gmra.mxu0 %v452
        %v648 = vpop.f32.mrf.mxu0
        %v649 = vadd.f32 0.0, %v648
        %v650 = vpop.f32.mrf.mxu0
        %651 = vmatprep.mubr.f32.mxu0 0.0
        %652 = vmatmul.mubr.f32.gmra.mxu0 %v455
        %v653 = vpop.f32.mrf.mxu0
        %v654 = vadd.f32 0.0, %v653
        %v655 = vpop.f32.mrf.mxu0
        %656 = vdwg.mxu0
        %v657 = vlaneseq
        %v658 = vshrl.u32 %v657, 7
        %v659 = vsub.s32 2, %v658
        %v660 = vrot.slane %v390, %v659
        %vm661 = vcmp.eq.s32.totalorder %v394, %v660
        %vm662 = vcmp.eq.s32.totalorder %v395, %v660
        %vm663 = vcmp.eq.s32.totalorder %v396, %v660
        %vm664 = vcmp.eq.s32.totalorder %v397, %v660
        %vm665 = vcmp.eq.s32.totalorder %v398, %v660
        %vm666 = vcmp.eq.s32.totalorder %v399, %v660
        %vm667 = vcmp.eq.s32.totalorder %v400, %v660
        %vm668 = vcmp.eq.s32.totalorder %v401, %v660
        %vm669 = vcmp.eq.s32.totalorder %v402, %v660
        %vm670 = vcmp.eq.s32.totalorder %v403, %v660
        %vm671 = vcmp.eq.s32.totalorder %v404, %v660
        %vm672 = vcmp.eq.s32.totalorder %v405, %v660
        %vm673 = vcmp.eq.s32.totalorder %v406, %v660
        %v674 = vsel %vm661, 1, 0
        %v675 = vsel %vm662, 1, 0
        %v676 = vsel %vm663, 1, 0
        %v677 = vsel %vm664, 1, 0
        %v678 = vsel %vm665, 1, 0
        %v679 = vsel %vm666, 1, 0
        %v680 = vsel %vm667, 1, 0
        %v681 = vsel %vm668, 1, 0
        %v682 = vsel %vm669, 1, 0
        %v683 = vsel %vm670, 1, 0
        %v684 = vsel %vm671, 1, 0
        %v685 = vsel %vm672, 1, 0
        %v686 = vsel %vm673, 1, 0
        %v687 = vcvt.s32.f32 %v674
        %v688 = vcvt.s32.f32 %v675
        %v689 = vcvt.s32.f32 %v676
        %v690 = vcvt.s32.f32 %v677
        %v691 = vcvt.s32.f32 %v678
        %v692 = vcvt.s32.f32 %v679
        %v693 = vcvt.s32.f32 %v680
        %v694 = vcvt.s32.f32 %v681
        %v695 = vcvt.s32.f32 %v682
        %v696 = vcvt.s32.f32 %v683
        %v697 = vcvt.s32.f32 %v684
        %v698 = vcvt.s32.f32 %v685
        %v699 = vcvt.s32.f32 %v686
        %v701 = vsel %vm457, %v699, 0
        %703 = vmatprep.subr.mxu0 0.0
        %704 = vmatpush1.msra.mxu0 0.0
        %705 = vmatprep.subr.mxu0 0.0
        %706 = vmatpush1.msra.mxu0 0.0
        %707 = vmatprep.subr.mxu0 0.0
        %708 = vmatpush1.msra.mxu0 0.0
        %709 = vmatprep.subr.mxu0 0.0
        %710 = vmatpush1.msra.mxu0 %v701
        %711 = vmatprep.subr.mxu0 0.0
        %712 = vmatpush1.msra.mxu0 %v698
        %713 = vmatprep.subr.mxu0 0.0
        %714 = vmatpush1.msra.mxu0 %v697
        %715 = vmatprep.subr.mxu0 0.0
        %716 = vmatpush1.msra.mxu0 %v696
        %717 = vmatprep.subr.mxu0 0.0
        %718 = vmatpush1.msra.mxu0 %v695
        %719 = vmatprep.subr.mxu0 0.0
        %720 = vmatpush1.msra.mxu0 %v694
        %721 = vmatprep.subr.mxu0 0.0
        %722 = vmatpush1.msra.mxu0 %v693
        %723 = vmatprep.subr.mxu0 0.0
        %724 = vmatpush1.msra.mxu0 %v692
        %725 = vmatprep.subr.mxu0 0.0
        %726 = vmatpush1.msra.mxu0 %v691
        %727 = vmatprep.subr.mxu0 0.0
        %728 = vmatpush1.msra.mxu0 %v690
        %729 = vmatprep.subr.mxu0 0.0
        %730 = vmatpush1.msra.mxu0 %v689
        %731 = vmatprep.subr.mxu0 0.0
        %732 = vmatpush1.msra.mxu0 %v688
        %733 = vmatprep.subr.mxu0 0.0
        %734 = vmatpush1.msra.mxu0 %v687
        %735 = vmatprep.subr.mxu0 0.0
        %736 = vmatpush2.msra.mxu0 0.0
        %737 = vmatprep.subr.mxu0 0.0
        %738 = vmatpush2.msra.mxu0 0.0
        %739 = vmatprep.subr.mxu0 0.0
        %740 = vmatpush2.msra.mxu0 0.0
        %741 = vmatprep.subr.mxu0 0.0
        %742 = vmatpush2.msra.mxu0 0.0
        %743 = vmatprep.subr.mxu0 0.0
        %744 = vmatpush2.msra.mxu0 0.0
        %745 = vmatprep.subr.mxu0 0.0
        %746 = vmatpush2.msra.mxu0 0.0
        %747 = vmatprep.subr.mxu0 0.0
        %748 = vmatpush2.msra.mxu0 0.0
        %749 = vmatprep.subr.mxu0 0.0
        %750 = vmatpush2.msra.mxu0 0.0
        %751 = vmatprep.subr.mxu0 0.0
        %752 = vmatpush2.msra.mxu0 0.0
        %753 = vmatprep.subr.mxu0 0.0
        %754 = vmatpush2.msra.mxu0 0.0
        %755 = vmatprep.subr.mxu0 0.0
        %756 = vmatpush2.msra.mxu0 0.0
        %757 = vmatprep.subr.mxu0 0.0
        %758 = vmatpush2.msra.mxu0 0.0
        %759 = vmatprep.subr.mxu0 0.0
        %760 = vmatpush2.msra.mxu0 0.0
        %761 = vmatprep.subr.mxu0 0.0
        %762 = vmatpush2.msra.mxu0 0.0
        %763 = vmatprep.subr.mxu0 0.0
        %764 = vmatpush2.msra.mxu0 0.0
        %765 = vmatprep.subr.mxu0 0.0
        %766 = vmatpush2.msra.mxu0 0.0
        %767 = vmatprep.mubr.f32.mxu0 0.0
        %768 = vmatmul.mubr.f32.gmra.mxu0 %v452
        %v769 = vpop.f32.mrf.mxu0
        %v770 = vadd.f32 0.0, %v769
        %v771 = vpop.f32.mrf.mxu0
        %772 = vmatprep.mubr.f32.mxu0 0.0
        %773 = vmatmul.mubr.f32.gmra.mxu0 %v455
        %v774 = vpop.f32.mrf.mxu0
        %v775 = vadd.f32 0.0, %v774
        %v776 = vpop.f32.mrf.mxu0
        %777 = vdwg.mxu0
        %v778 = vlaneseq
        %v779 = vshrl.u32 %v778, 7
        %v780 = vsub.s32 3, %v779
        %v781 = vrot.slane %v390, %v780
        %vm782 = vcmp.eq.s32.totalorder %v394, %v781
        %vm783 = vcmp.eq.s32.totalorder %v395, %v781
        %vm784 = vcmp.eq.s32.totalorder %v396, %v781
        %vm785 = vcmp.eq.s32.totalorder %v397, %v781
        %vm786 = vcmp.eq.s32.totalorder %v398, %v781
        %vm787 = vcmp.eq.s32.totalorder %v399, %v781
        %vm788 = vcmp.eq.s32.totalorder %v400, %v781
        %vm789 = vcmp.eq.s32.totalorder %v401, %v781
        %vm790 = vcmp.eq.s32.totalorder %v402, %v781
        %vm791 = vcmp.eq.s32.totalorder %v403, %v781
        %vm792 = vcmp.eq.s32.totalorder %v404, %v781
        %vm793 = vcmp.eq.s32.totalorder %v405, %v781
        %vm794 = vcmp.eq.s32.totalorder %v406, %v781
        %v795 = vsel %vm782, 1, 0
        %v796 = vsel %vm783, 1, 0
        %v797 = vsel %vm784, 1, 0
        %v798 = vsel %vm785, 1, 0
        %v799 = vsel %vm786, 1, 0
        %v800 = vsel %vm787, 1, 0
        %v801 = vsel %vm788, 1, 0
        %v802 = vsel %vm789, 1, 0
        %v803 = vsel %vm790, 1, 0
        %v804 = vsel %vm791, 1, 0
        %v805 = vsel %vm792, 1, 0
        %v806 = vsel %vm793, 1, 0
        %v807 = vsel %vm794, 1, 0
        %v808 = vcvt.s32.f32 %v795
        %v809 = vcvt.s32.f32 %v796
        %v810 = vcvt.s32.f32 %v797
        %v811 = vcvt.s32.f32 %v798
        %v812 = vcvt.s32.f32 %v799
        %v813 = vcvt.s32.f32 %v800
        %v814 = vcvt.s32.f32 %v801
        %v815 = vcvt.s32.f32 %v802
        %v816 = vcvt.s32.f32 %v803
        %v817 = vcvt.s32.f32 %v804
        %v818 = vcvt.s32.f32 %v805
        %v819 = vcvt.s32.f32 %v806
        %v820 = vcvt.s32.f32 %v807
        %v822 = vsel %vm457, %v820, 0
        %824 = vmatprep.subr.mxu0 0.0
        %825 = vmatpush1.msra.mxu0 0.0
        %826 = vmatprep.subr.mxu0 0.0
        %827 = vmatpush1.msra.mxu0 0.0
        %828 = vmatprep.subr.mxu0 0.0
        %829 = vmatpush1.msra.mxu0 0.0
        %830 = vmatprep.subr.mxu0 0.0
        %831 = vmatpush1.msra.mxu0 %v822
        %832 = vmatprep.subr.mxu0 0.0
        %833 = vmatpush1.msra.mxu0 %v819
        %834 = vmatprep.subr.mxu0 0.0
        %835 = vmatpush1.msra.mxu0 %v818
        %836 = vmatprep.subr.mxu0 0.0
        %837 = vmatpush1.msra.mxu0 %v817
        %838 = vmatprep.subr.mxu0 0.0
        %839 = vmatpush1.msra.mxu0 %v816
        %840 = vmatprep.subr.mxu0 0.0
        %841 = vmatpush1.msra.mxu0 %v815
        %842 = vmatprep.subr.mxu0 0.0
        %843 = vmatpush1.msra.mxu0 %v814
        %844 = vmatprep.subr.mxu0 0.0
        %845 = vmatpush1.msra.mxu0 %v813
        %846 = vmatprep.subr.mxu0 0.0
        %847 = vmatpush1.msra.mxu0 %v812
        %848 = vmatprep.subr.mxu0 0.0
        %849 = vmatpush1.msra.mxu0 %v811
        %850 = vmatprep.subr.mxu0 0.0
        %851 = vmatpush1.msra.mxu0 %v810
        %852 = vmatprep.subr.mxu0 0.0
        %853 = vmatpush1.msra.mxu0 %v809
        %854 = vmatprep.subr.mxu0 0.0
        %855 = vmatpush1.msra.mxu0 %v808
        %856 = vmatprep.subr.mxu0 0.0
        %857 = vmatpush2.msra.mxu0 0.0
        %858 = vmatprep.subr.mxu0 0.0
        %859 = vmatpush2.msra.mxu0 0.0
        %860 = vmatprep.subr.mxu0 0.0
        %861 = vmatpush2.msra.mxu0 0.0
        %862 = vmatprep.subr.mxu0 0.0
        %863 = vmatpush2.msra.mxu0 0.0
        %864 = vmatprep.subr.mxu0 0.0
        %865 = vmatpush2.msra.mxu0 0.0
        %866 = vmatprep.subr.mxu0 0.0
        %867 = vmatpush2.msra.mxu0 0.0
        %868 = vmatprep.subr.mxu0 0.0
        %869 = vmatpush2.msra.mxu0 0.0
        %870 = vmatprep.subr.mxu0 0.0
        %871 = vmatpush2.msra.mxu0 0.0
        %872 = vmatprep.subr.mxu0 0.0
        %873 = vmatpush2.msra.mxu0 0.0
        %874 = vmatprep.subr.mxu0 0.0
        %875 = vmatpush2.msra.mxu0 0.0
        %876 = vmatprep.subr.mxu0 0.0
        %877 = vmatpush2.msra.mxu0 0.0
        %878 = vmatprep.subr.mxu0 0.0
        %879 = vmatpush2.msra.mxu0 0.0
        %880 = vmatprep.subr.mxu0 0.0
        %881 = vmatpush2.msra.mxu0 0.0
        %882 = vmatprep.subr.mxu0 0.0
        %883 = vmatpush2.msra.mxu0 0.0
        %884 = vmatprep.subr.mxu0 0.0
        %885 = vmatpush2.msra.mxu0 0.0
        %886 = vmatprep.subr.mxu0 0.0
        %887 = vmatpush2.msra.mxu0 0.0
        %888 = vmatprep.mubr.f32.mxu0 0.0
        %889 = vmatmul.mubr.f32.gmra.mxu0 %v452
        %v890 = vpop.f32.mrf.mxu0
        %v891 = vadd.f32 0.0, %v890
        %v892 = vpop.f32.mrf.mxu0
        %893 = vmatprep.mubr.f32.mxu0 0.0
        %894 = vmatmul.mubr.f32.gmra.mxu0 %v455
        %v895 = vpop.f32.mrf.mxu0
        %v896 = vadd.f32 0.0, %v895
        %v897 = vpop.f32.mrf.mxu0
        %898 = vdwg.mxu0
        %v899 = vmul.f32 %v528, %v649
        %v900 = vmul.f32 %v533, %v654
        %v901 = vmul.f32 %v528, %v770
        %v902 = vmul.f32 %v533, %v775
        %v903 = vmul.f32 %v528, %v891
        %v904 = vmul.f32 %v533, %v896
        %v905 = vmul.f32 %v649, %v770
        %v906 = vmul.f32 %v654, %v775
        %v907 = vmul.f32 %v649, %v891
        %v908 = vmul.f32 %v654, %v896
        %v909 = vmul.f32 %v770, %v891
        %v910 = vmul.f32 %v775, %v896
        %v911 = vld [vmem:[%s2] sm:$0xff]
        %v912 = vld [vmem:[%s2 + $0x8] sm:$0xff]
        %v913 = vld [vmem:[%s2 + $0x10] sm:$0xff]
        %v914 = vld [vmem:[%s2 + $0x18] sm:$0xff]
        %v915 = vld [vmem:[%s3] sm:$0xff]
        %v916 = vld [vmem:[%s3 + $0x8] sm:$0xff]
        %v917 = vld [vmem:[%s3 + $0x10] sm:$0xff]
        %v918 = vld [vmem:[%s3 + $0x18] sm:$0xff]
        %vm919 = vcmask 785408
        %v921 = vsel %vm919, %v915, 0
        %v924 = vsel %vm919, %v916, 0
        %v927 = vsel %vm919, %v917, 0
        %v930 = vsel %vm919, %v918, 0
        %932 = vmatprep.subr.mxu0 0.0
        %933 = vmatpush1.msra.mxu0 0.0
        %934 = vmatprep.subr.mxu0 0.0
        %935 = vmatpush1.msra.mxu0 0.0
        %936 = vmatprep.subr.mxu0 0.0
        %937 = vmatpush1.msra.mxu0 0.0
        %938 = vmatprep.subr.mxu0 0.0
        %939 = vmatpush1.msra.mxu0 0.0
        %940 = vmatprep.subr.mxu0 0.0
        %941 = vmatpush1.msra.mxu0 %v910
        %942 = vmatprep.subr.mxu0 0.0
        %943 = vmatpush1.msra.mxu0 %v909
        %944 = vmatprep.subr.mxu0 0.0
        %945 = vmatpush1.msra.mxu0 %v908
        %946 = vmatprep.subr.mxu0 0.0
        %947 = vmatpush1.msra.mxu0 %v907
        %948 = vmatprep.subr.mxu0 0.0
        %949 = vmatpush1.msra.mxu0 %v906
        %950 = vmatprep.subr.mxu0 0.0
        %951 = vmatpush1.msra.mxu0 %v905
        %952 = vmatprep.subr.mxu0 0.0
        %953 = vmatpush1.msra.mxu0 %v904
        %954 = vmatprep.subr.mxu0 0.0
        %955 = vmatpush1.msra.mxu0 %v903
        %956 = vmatprep.subr.mxu0 0.0
        %957 = vmatpush1.msra.mxu0 %v902
        %958 = vmatprep.subr.mxu0 0.0
        %959 = vmatpush1.msra.mxu0 %v901
        %960 = vmatprep.subr.mxu0 0.0
        %961 = vmatpush1.msra.mxu0 %v900
        %962 = vmatprep.subr.mxu0 0.0
        %963 = vmatpush1.msra.mxu0 %v899
        %964 = vmatprep.subr.mxu0 0.0
        %965 = vmatpush2.msra.mxu0 0.0
        %966 = vmatprep.subr.mxu0 0.0
        %967 = vmatpush2.msra.mxu0 0.0
        %968 = vmatprep.subr.mxu0 0.0
        %969 = vmatpush2.msra.mxu0 0.0
        %970 = vmatprep.subr.mxu0 0.0
        %971 = vmatpush2.msra.mxu0 0.0
        %972 = vmatprep.subr.mxu0 0.0
        %973 = vmatpush2.msra.mxu0 0.0
        %974 = vmatprep.subr.mxu0 0.0
        %975 = vmatpush2.msra.mxu0 0.0
        %976 = vmatprep.subr.mxu0 0.0
        %977 = vmatpush2.msra.mxu0 0.0
        %978 = vmatprep.subr.mxu0 0.0
        %979 = vmatpush2.msra.mxu0 0.0
        %980 = vmatprep.subr.mxu0 0.0
        %981 = vmatpush2.msra.mxu0 0.0
        %982 = vmatprep.subr.mxu0 0.0
        %983 = vmatpush2.msra.mxu0 0.0
        %984 = vmatprep.subr.mxu0 0.0
        %985 = vmatpush2.msra.mxu0 0.0
        %986 = vmatprep.subr.mxu0 0.0
        %987 = vmatpush2.msra.mxu0 0.0
        %988 = vmatprep.subr.mxu0 0.0
        %989 = vmatpush2.msra.mxu0 0.0
        %990 = vmatprep.subr.mxu0 0.0
        %991 = vmatpush2.msra.mxu0 0.0
        %992 = vmatprep.subr.mxu0 0.0
        %993 = vmatpush2.msra.mxu0 0.0
        %994 = vmatprep.subr.mxu0 0.0
        %995 = vmatpush2.msra.mxu0 0.0
        %996 = vmatprep.mubr.f32.mxu0 0.0
        %997 = vmatmul.mubr.f32.gmra.mxu0 %v921
        %v998 = vpop.f32.mrf.mxu0
        %v999 = vadd.f32 0.0, %v998
        %v1000 = vpop.f32.mrf.mxu0
        %1001 = vmatprep.mubr.f32.mxu0 0.0
        %1002 = vmatmul.mubr.f32.gmra.mxu0 %v924
        %v1003 = vpop.f32.mrf.mxu0
        %v1004 = vadd.f32 0.0, %v1003
        %v1005 = vpop.f32.mrf.mxu0
        %1006 = vmatprep.mubr.f32.mxu0 0.0
        %1007 = vmatmul.mubr.f32.gmra.mxu0 %v927
        %v1008 = vpop.f32.mrf.mxu0
        %v1009 = vadd.f32 0.0, %v1008
        %v1010 = vpop.f32.mrf.mxu0
        %1011 = vmatprep.mubr.f32.mxu0 0.0
        %1012 = vmatmul.mubr.f32.gmra.mxu0 %v930
        %v1013 = vpop.f32.mrf.mxu0
        %v1014 = vadd.f32 0.0, %v1013
        %v1015 = vpop.f32.mrf.mxu0
        %1016 = vdwg.mxu0
        %vm1017 = vcmask 523264
        %v1019 = vsel %vm1017, %v911, 0
        %v1022 = vsel %vm1017, %v912, 0
        %v1025 = vsel %vm1017, %v913, 0
        %v1028 = vsel %vm1017, %v914, 0
        %1030 = vmatprep.subr.mxu0 0.0
        %1031 = vmatpush1.msra.mxu0 0.0
        %1032 = vmatprep.subr.mxu0 0.0
        %1033 = vmatpush1.msra.mxu0 0.0
        %1034 = vmatprep.subr.mxu0 0.0
        %1035 = vmatpush1.msra.mxu0 0.0
        %1036 = vmatprep.subr.mxu0 0.0
        %1037 = vmatpush1.msra.mxu0 0.0
        %1038 = vmatprep.subr.mxu0 0.0
        %1039 = vmatpush1.msra.mxu0 0.0
        %1040 = vmatprep.subr.mxu0 0.0
        %1041 = vmatpush1.msra.mxu0 0.0
        %1042 = vmatprep.subr.mxu0 0.0
        %1043 = vmatpush1.msra.mxu0 0.0
        %1044 = vmatprep.subr.mxu0 0.0
        %1045 = vmatpush1.msra.mxu0 0.0
        %1046 = vmatprep.subr.mxu0 0.0
        %1047 = vmatpush1.msra.mxu0 %v896
        %1048 = vmatprep.subr.mxu0 0.0
        %1049 = vmatpush1.msra.mxu0 %v891
        %1050 = vmatprep.subr.mxu0 0.0
        %1051 = vmatpush1.msra.mxu0 %v775
        %1052 = vmatprep.subr.mxu0 0.0
        %1053 = vmatpush1.msra.mxu0 %v770
        %1054 = vmatprep.subr.mxu0 0.0
        %1055 = vmatpush1.msra.mxu0 %v654
        %1056 = vmatprep.subr.mxu0 0.0
        %1057 = vmatpush1.msra.mxu0 %v649
        %1058 = vmatprep.subr.mxu0 0.0
        %1059 = vmatpush1.msra.mxu0 %v533
        %1060 = vmatprep.subr.mxu0 0.0
        %1061 = vmatpush1.msra.mxu0 %v528
        %1062 = vmatprep.subr.mxu0 0.0
        %1063 = vmatpush2.msra.mxu0 0.0
        %1064 = vmatprep.subr.mxu0 0.0
        %1065 = vmatpush2.msra.mxu0 0.0
        %1066 = vmatprep.subr.mxu0 0.0
        %1067 = vmatpush2.msra.mxu0 0.0
        %1068 = vmatprep.subr.mxu0 0.0
        %1069 = vmatpush2.msra.mxu0 0.0
        %1070 = vmatprep.subr.mxu0 0.0
        %1071 = vmatpush2.msra.mxu0 0.0
        %1072 = vmatprep.subr.mxu0 0.0
        %1073 = vmatpush2.msra.mxu0 0.0
        %1074 = vmatprep.subr.mxu0 0.0
        %1075 = vmatpush2.msra.mxu0 0.0
        %1076 = vmatprep.subr.mxu0 0.0
        %1077 = vmatpush2.msra.mxu0 0.0
        %1078 = vmatprep.subr.mxu0 0.0
        %1079 = vmatpush2.msra.mxu0 0.0
        %1080 = vmatprep.subr.mxu0 0.0
        %1081 = vmatpush2.msra.mxu0 0.0
        %1082 = vmatprep.subr.mxu0 0.0
        %1083 = vmatpush2.msra.mxu0 0.0
        %1084 = vmatprep.subr.mxu0 0.0
        %1085 = vmatpush2.msra.mxu0 0.0
        %1086 = vmatprep.subr.mxu0 0.0
        %1087 = vmatpush2.msra.mxu0 0.0
        %1088 = vmatprep.subr.mxu0 0.0
        %1089 = vmatpush2.msra.mxu0 0.0
        %1090 = vmatprep.subr.mxu0 0.0
        %1091 = vmatpush2.msra.mxu0 0.0
        %1092 = vmatprep.subr.mxu0 0.0
        %1093 = vmatpush2.msra.mxu0 0.0
        %1094 = vmatprep.mubr.f32.mxu0 0.0
        %1095 = vmatmul.mubr.f32.gmra.mxu0 %v1019
        %v1096 = vpop.f32.mrf.mxu0
        %v1097 = vadd.f32 %v999, %v1096
        %v1098 = vpop.f32.mrf.mxu0
        %1099 = vmatprep.mubr.f32.mxu0 0.0
        %1100 = vmatmul.mubr.f32.gmra.mxu0 %v1022
        %v1101 = vpop.f32.mrf.mxu0
        %v1102 = vadd.f32 %v1004, %v1101
        %v1103 = vpop.f32.mrf.mxu0
        %1104 = vmatprep.mubr.f32.mxu0 0.0
        %1105 = vmatmul.mubr.f32.gmra.mxu0 %v1025
        %v1106 = vpop.f32.mrf.mxu0
        %v1107 = vadd.f32 %v1009, %v1106
        %v1108 = vpop.f32.mrf.mxu0
        %1109 = vmatprep.mubr.f32.mxu0 0.0
        %1110 = vmatmul.mubr.f32.gmra.mxu0 %v1028
        %v1111 = vpop.f32.mrf.mxu0
        %v1112 = vadd.f32 %v1014, %v1111
        %v1113 = vpop.f32.mrf.mxu0
        %1114 = vdwg.mxu0
        %v1115 = vld [vmem:[%s4] sm:$0xff]
        %v1116 = vld [vmem:[%s4 + $0x8] sm:$0xff]
        %v1117 = vld [vmem:[%s4 + $0x10] sm:$0xff]
        %v1118 = vld [vmem:[%s4 + $0x18] sm:$0xff]
        %1120 = vset.pattern.permute.xlu0 0
        %1121 = vperm.xlu0 %1120, %v1115
        %v1122 = vpop.permute.xlu0 %1121
        %1125 = vset.pattern.permute.xlu0 0
        %1126 = vperm.xlu0 %1125, %v1116
        %v1127 = vpop.permute.xlu0 %1126
        %1130 = vset.pattern.permute.xlu0 0
        %1131 = vperm.xlu0 %1130, %v1117
        %v1132 = vpop.permute.xlu0 %1131
        %1135 = vset.pattern.permute.xlu0 0
        %1136 = vperm.xlu0 %1135, %v1118
        %v1137 = vpop.permute.xlu0 %1136
        %v1139 = vadd.f32 %v1097, %v1122
        %v1140 = vadd.f32 %v1102, %v1127
        %v1141 = vadd.f32 %v1107, %v1132
        %v1142 = vadd.f32 %v1112, %v1137
        %v1143 = vmax.f32 %v1139, 0.0
        %v1144 = vmax.f32 %v1140, 0.0
        %v1145 = vmax.f32 %v1141, 0.0
        %v1146 = vmax.f32 %v1142, 0.0
        %v1147 = vld [vmem:[#allocation7] sm:$0xff]
        %v1148 = vld [vmem:[#allocation7 + $0x8] sm:$0xff]
        %v1149 = vld [vmem:[%s6] sm:$0xff]
        %v1150 = vld [vmem:[%s6 + $0x8] sm:$0xff]
        %1152 = vset.pattern.permute.xlu0 0
        %1153 = vperm.xlu0 %1152, %v1149
        %v1154 = vpop.permute.xlu0 %1153
        %1157 = vset.pattern.permute.xlu0 0
        %1158 = vperm.xlu0 %1157, %v1150
        %v1159 = vpop.permute.xlu0 %1158
        %vm1161 = vcmask 261120
        %v1163 = vsel %vm1161, %v1147, 0
        %v1166 = vsel %vm1161, %v1148, 0
        %1168 = vmatprep.subr.mxu0 0.0
        %1169 = vmatpush1.msra.mxu0 0.0
        %1170 = vmatprep.subr.mxu0 0.0
        %1171 = vmatpush1.msra.mxu0 0.0
        %1172 = vmatprep.subr.mxu0 0.0
        %1173 = vmatpush1.msra.mxu0 0.0
        %1174 = vmatprep.subr.mxu0 0.0
        %1175 = vmatpush1.msra.mxu0 0.0
        %1176 = vmatprep.subr.mxu0 0.0
        %1177 = vmatpush1.msra.mxu0 0.0
        %1178 = vmatprep.subr.mxu0 0.0
        %1179 = vmatpush1.msra.mxu0 0.0
        %1180 = vmatprep.subr.mxu0 0.0
        %1181 = vmatpush1.msra.mxu0 0.0
        %1182 = vmatprep.subr.mxu0 0.0
        %1183 = vmatpush1.msra.mxu0 0.0
        %1184 = vmatprep.subr.mxu0 0.0
        %1185 = vmatpush1.msra.mxu0 0.0
        %1186 = vmatprep.subr.mxu0 0.0
        %1187 = vmatpush1.msra.mxu0 0.0
        %1188 = vmatprep.subr.mxu0 0.0
        %1189 = vmatpush1.msra.mxu0 0.0
        %1190 = vmatprep.subr.mxu0 0.0
        %1191 = vmatpush1.msra.mxu0 0.0
        %1192 = vmatprep.subr.mxu0 0.0
        %1193 = vmatpush1.msra.mxu0 %v1146
        %1194 = vmatprep.subr.mxu0 0.0
        %1195 = vmatpush1.msra.mxu0 %v1145
        %1196 = vmatprep.subr.mxu0 0.0
        %1197 = vmatpush1.msra.mxu0 %v1144
        %1198 = vmatprep.subr.mxu0 0.0
        %1199 = vmatpush1.msra.mxu0 %v1143
        %1200 = vmatprep.subr.mxu0 0.0
        %1201 = vmatpush2.msra.mxu0 0.0
        %1202 = vmatprep.subr.mxu0 0.0
        %1203 = vmatpush2.msra.mxu0 0.0
        %1204 = vmatprep.subr.mxu0 0.0
        %1205 = vmatpush2.msra.mxu0 0.0
        %1206 = vmatprep.subr.mxu0 0.0
        %1207 = vmatpush2.msra.mxu0 0.0
        %1208 = vmatprep.subr.mxu0 0.0
        %1209 = vmatpush2.msra.mxu0 0.0
        %1210 = vmatprep.subr.mxu0 0.0
        %1211 = vmatpush2.msra.mxu0 0.0
        %1212 = vmatprep.subr.mxu0 0.0
        %1213 = vmatpush2.msra.mxu0 0.0
        %1214 = vmatprep.subr.mxu0 0.0
        %1215 = vmatpush2.msra.mxu0 0.0
        %1216 = vmatprep.subr.mxu0 0.0
        %1217 = vmatpush2.msra.mxu0 0.0
        %1218 = vmatprep.subr.mxu0 0.0
        %1219 = vmatpush2.msra.mxu0 0.0
        %1220 = vmatprep.subr.mxu0 0.0
        %1221 = vmatpush2.msra.mxu0 0.0
        %1222 = vmatprep.subr.mxu0 0.0
        %1223 = vmatpush2.msra.mxu0 0.0
        %1224 = vmatprep.subr.mxu0 0.0
        %1225 = vmatpush2.msra.mxu0 0.0
        %1226 = vmatprep.subr.mxu0 0.0
        %1227 = vmatpush2.msra.mxu0 0.0
        %1228 = vmatprep.subr.mxu0 0.0
        %1229 = vmatpush2.msra.mxu0 0.0
        %1230 = vmatprep.subr.mxu0 0.0
        %1231 = vmatpush2.msra.mxu0 0.0
        %1232 = vmatprep.mubr.f32.mxu0 0.0
        %1233 = vmatmul.mubr.f32.gmra.mxu0 %v1163
        %v1234 = vpop.f32.mrf.mxu0
        %v1235 = vadd.f32 %v1154, %v1234
        %v1236 = vpop.f32.mrf.mxu0
        %1237 = vmatprep.mubr.f32.mxu0 0.0
        %1238 = vmatmul.mubr.f32.gmra.mxu0 %v1166
        %v1239 = vpop.f32.mrf.mxu0
        %v1240 = vadd.f32 %v1159, %v1239
        %v1241 = vpop.f32.mrf.mxu0
        %1242 = vdwg.mxu0
        %v1243 = vmax.f32 %v1235, 0.0
        %v1244 = vmax.f32 %v1240, 0.0
        %v1245 = vld [vmem:[#allocation8] sm:$0xff]
        %v1246 = vld [vmem:[%s8] sm:$0xff]
        %1248 = vset.pattern.permute.xlu0 0
        %1249 = vperm.xlu0 %1248, %v1246
        %v1250 = vpop.permute.xlu0 %1249
        %vm1252 = vcmask 130048
        %v1254 = vsel %vm1252, %v1245, 0
        %1256 = vmatprep.subr.mxu0 0.0
        %1257 = vmatpush1.msra.mxu0 0.0
        %1258 = vmatprep.subr.mxu0 0.0
        %1259 = vmatpush1.msra.mxu0 0.0
        %1260 = vmatprep.subr.mxu0 0.0
        %1261 = vmatpush1.msra.mxu0 0.0
        %1262 = vmatprep.subr.mxu0 0.0
        %1263 = vmatpush1.msra.mxu0 0.0
        %1264 = vmatprep.subr.mxu0 0.0
        %1265 = vmatpush1.msra.mxu0 0.0
        %1266 = vmatprep.subr.mxu0 0.0
        %1267 = vmatpush1.msra.mxu0 0.0
        %1268 = vmatprep.subr.mxu0 0.0
        %1269 = vmatpush1.msra.mxu0 0.0
        %1270 = vmatprep.subr.mxu0 0.0
        %1271 = vmatpush1.msra.mxu0 0.0
        %1272 = vmatprep.subr.mxu0 0.0
        %1273 = vmatpush1.msra.mxu0 0.0
        %1274 = vmatprep.subr.mxu0 0.0
        %1275 = vmatpush1.msra.mxu0 0.0
        %1276 = vmatprep.subr.mxu0 0.0
        %1277 = vmatpush1.msra.mxu0 0.0
        %1278 = vmatprep.subr.mxu0 0.0
        %1279 = vmatpush1.msra.mxu0 0.0
        %1280 = vmatprep.subr.mxu0 0.0
        %1281 = vmatpush1.msra.mxu0 0.0
        %1282 = vmatprep.subr.mxu0 0.0
        %1283 = vmatpush1.msra.mxu0 0.0
        %1284 = vmatprep.subr.mxu0 0.0
        %1285 = vmatpush1.msra.mxu0 %v1244
        %1286 = vmatprep.subr.mxu0 0.0
        %1287 = vmatpush1.msra.mxu0 %v1243
        %1288 = vmatprep.subr.mxu0 0.0
        %1289 = vmatpush2.msra.mxu0 0.0
        %1290 = vmatprep.subr.mxu0 0.0
        %1291 = vmatpush2.msra.mxu0 0.0
        %1292 = vmatprep.subr.mxu0 0.0
        %1293 = vmatpush2.msra.mxu0 0.0
        %1294 = vmatprep.subr.mxu0 0.0
        %1295 = vmatpush2.msra.mxu0 0.0
        %1296 = vmatprep.subr.mxu0 0.0
        %1297 = vmatpush2.msra.mxu0 0.0
        %1298 = vmatprep.subr.mxu0 0.0
        %1299 = vmatpush2.msra.mxu0 0.0
        %1300 = vmatprep.subr.mxu0 0.0
        %1301 = vmatpush2.msra.mxu0 0.0
        %1302 = vmatprep.subr.mxu0 0.0
        %1303 = vmatpush2.msra.mxu0 0.0
        %1304 = vmatprep.subr.mxu0 0.0
        %1305 = vmatpush2.msra.mxu0 0.0
        %1306 = vmatprep.subr.mxu0 0.0
        %1307 = vmatpush2.msra.mxu0 0.0
        %1308 = vmatprep.subr.mxu0 0.0
        %1309 = vmatpush2.msra.mxu0 0.0
        %1310 = vmatprep.subr.mxu0 0.0
        %1311 = vmatpush2.msra.mxu0 0.0
        %1312 = vmatprep.subr.mxu0 0.0
        %1313 = vmatpush2.msra.mxu0 0.0
        %1314 = vmatprep.subr.mxu0 0.0
        %1315 = vmatpush2.msra.mxu0 0.0
        %1316 = vmatprep.subr.mxu0 0.0
        %1317 = vmatpush2.msra.mxu0 0.0
        %1318 = vmatprep.subr.mxu0 0.0
        %1319 = vmatpush2.msra.mxu0 0.0
        %1320 = vmatprep.mubr.f32.mxu0 0.0
        %1321 = vmatmul.mubr.f32.gmra.mxu0 %v1254
        %v1322 = vpop.f32.mrf.mxu0
        %v1323 = vadd.f32 %v1250, %v1322
        %v1324 = vpop.f32.mrf.mxu0
        %1325 = vdwg.mxu0
        %1326 = vst [vmem:[%s389] sm:$0xff] %v1323
        %s1327 = sand.u32 %s230, 1
        %s1328 = scalar_lea.sflag [#allocation4], %s1327
        %s1329 = sand.u32 %s230, 1
        %s1330 = smul.addr %s1329, 8
        %s1331 = scalar_lea.vmem [#allocation10], %s1330
        // Predicated region
        $region73: #{tpu_custom_call.1} parent=55 // pred_check
          %p1332 = pneg %p240
        $region74: #{tpu_custom_call.1} parent=55 // pred_check_branch
          %1334 = sbr.rel (%p1332) target = $region76
        $region75: #{tpu_custom_call.1} parent=55 // pred_region
          %s1336 = ssub.s32 128, 128
          %1337 = vsyncadd %s1328, %s1336
          %s1338 = smul.addr %s28, 128
          %s1339 = scalar_lea.hbm %s9, %s1338
          %s1341 = sshll.u32 %s1331, 4
          %s1342 = int_to_ptr.vmem [resolvable:$true] %s1341
          %1344 = dma.vmem_to_hbm [thread:$0]  %s1342, 128, %s1339, %s1328
        $region76: #{tpu_custom_call.1} parent=55 // pred_fallthru
          _
      $region56: #{tpu_custom_call.1} parent=5 // pred_fallthru
        _
      %p1345 = scmp.le.s32.totalorder 2, %s23
      // Predicated region
      $region77: #{tpu_custom_call.1} parent=5 // pred_check
        %p1346 = pneg %p1345
      $region78: #{tpu_custom_call.1} parent=5 // pred_check_branch
        %1348 = sbr.rel (%p1346) target = $region80
      $region79: #{tpu_custom_call.1} parent=5 // pred_region
        %s1349 = ssub.s32 %s23, 2
        // Predicated region
        $region81: #{tpu_custom_call.1} parent=79 // pred_check
          %p1350 = pneg %p246
        $region82: #{tpu_custom_call.1} parent=79 // pred_check_branch
          %1352 = sbr.rel (%p1350) target = $region84
        $region83: #{tpu_custom_call.1} parent=79 // pred_region
          %s1353 = sand.u32 %s231, 1
          %s1354 = scalar_lea.sflag [#allocation4], %s1353
          %s1355 = sand.u32 %s231, 1
          %s1356 = smul.addr %s1355, 8
          %s1357 = scalar_lea.vmem [#allocation10], %s1356
          %1358 = dma.done %s1354, 128
        $region84: #{tpu_custom_call.1} parent=79 // pred_fallthru
          _
      $region80: #{tpu_custom_call.1} parent=5 // pred_fallthru
        _
    $region6: #{tpu_custom_call.1} parent=1 // loop_footer
      %s27 = sadd.s32 1, %s23
    $region7: #{tpu_custom_call.1} parent=1 // loop_footer_branch
      %22 = sbr.rel target = $region3
    $region8: #{tpu_custom_call.1} parent=1 // loop_exit
      _
    %1359 = vsyncpa [#allocation3], 1
    %s1360 = scalar_lea.sflag [#allocation3], 1
    %1361 = vsyncpa %s1360, 1
    %1362 = vsyncpa [#allocation6], 1
    %1363 = vsyncpa [#allocation9], 1
    %1364 = vsyncpa [#allocation4], 1
    %s1365 = scalar_lea.sflag [#allocation4], 1
    %1366 = vsyncpa %s1365, 1

</llo_original>
